<compile_context>
chip_gen: v7x
topology: tpu7x:2x2x1
jax: 0.10.0
libtpu: 0.0.40
codegen_flags: <defaults>
</compile_context>

<pallas_src>
import math

import jax
import jax.numpy as jnp
from jax.experimental import pallas as pl
from jax.experimental.pallas import tpu as pltpu

_VPU_K_MAX = 8  # layers with fan-in <= this run as unrolled exact-f32 VPU FMAs


def _round_up(x, m):
    return ((x + m - 1) // m) * m


def _make_siren_kernel(num_linear, sine_w0):
    """Kernel args: x_ref, w_0, b_0, ..., w_{L-1}, b_{L-1}, o_ref.

    x_ref : (C_in,  tile_m) f32   (channel-major: pixels on lanes)
    w_l   : (d_out, d_in)         f32 if d_in <= _VPU_K_MAX else bf16
    b_l   : (d_out, 1) f32
    o_ref : (C_out, tile_m) f32
    """
    def kernel(x_ref, *refs):
        o_ref = refs[-1]
        wb = refs[:-1]
        h = x_ref[...]                                      # (C_in, tile_m) f32
        for l in range(num_linear):
            w = wb[2 * l][...]                              # (d_out, d_in)
            b = wb[2 * l + 1][...]                          # (d_out, 1)
            d_out, d_in = w.shape
            if d_in <= _VPU_K_MAX:
                # Tiny fan-in layer: unrolled broadcast-FMAs on the VPU,
                # exact f32 (avoids an MXU dot with K padded 4 -> 128).
                acc = w[:, 0:1] * h[0:1, :]
                for c in range(1, d_in):
                    acc = acc + w[:, c:c + 1] * h[c:c + 1, :]
                h = acc + b                                 # (d_out, tile_m) f32
            else:
                # Single-pass bf16 MXU dot, f32 accumulation.
                h = jnp.dot(w, h.astype(w.dtype),
                            preferred_element_type=jnp.float32) + b
            if l < num_linear - 1:
                # Sine activation: sin(w0 * x + b0), b0 == 0 in the module.
                h = jnp.sin(sine_w0[l] * h)
        # Final tanh from SIREN.forward.
        o_ref[...] = jnp.tanh(h).astype(o_ref.dtype)

    return kernel


def siren_pallas(x_nchw, weights, biases, *, w0=1.0, w0_initial=30.0, tile_m=2048):
    """Forward pass of the SIREN module.

    x_nchw : (B, C_in, H, W) float32
    weights: list of (d_in, d_out) float32  (transposed vs torch Linear storage)
    biases : list of (d_out,) float32
    returns: (B, C_out, H, W) float32
    """
    B, Cin, H, W = x_nchw.shape
    L = len(weights)
    Cout = weights[-1].shape[1]
    sine_w0 = [float(w0_initial)] + [float(w0)] * (L - 2)

    HW = H * W
    x3 = x_nchw.reshape(B, Cin, HW).astype(jnp.float32)

    # Pixel tile: multiple of 128 lanes, capped by the (padded) pixel count.
    tile = _round_up(min(int(tile_m), _round_up(HW, 128)), 128)
    HW_pad = _round_up(HW, tile)
    if HW_pad != HW:
        x3 = jnp.pad(x3, ((0, 0), (0, 0), (0, HW_pad - HW)))
    n_tiles = HW_pad // tile

    # Pre-transpose weights to (d_out, d_in); bf16 for the MXU layers.
    flat = [x3]
    in_specs = [pl.BlockSpec((None, Cin, tile), lambda b, i: (b, 0, i))]
    for wgt, bias in zip(weights, biases):
        wT = jnp.asarray(wgt, jnp.float32).T                 # (d_out, d_in)
        if wT.shape[1] > _VPU_K_MAX:
            wT = wT.astype(jnp.bfloat16)                     # single-pass MXU
        bc = jnp.asarray(bias, jnp.float32).reshape(-1, 1)   # (d_out, 1)
        flat.append(wT)
        in_specs.append(pl.BlockSpec(wT.shape, lambda b, i: (0, 0)))
        flat.append(bc)
        in_specs.append(pl.BlockSpec(bc.shape, lambda b, i: (0, 0)))

    kernel = _make_siren_kernel(L, sine_w0)

    y = pl.pallas_call(
        kernel,
        out_shape=jax.ShapeDtypeStruct((B, Cout, HW_pad), jnp.float32),
        grid=(B, n_tiles),
        in_specs=in_specs,
        out_specs=pl.BlockSpec((None, Cout, tile), lambda b, i: (b, 0, i)),
        compiler_params=pltpu.CompilerParams(
            dimension_semantics=("parallel", "parallel"),
        ),
    )(*flat)

    if HW_pad != HW:
        y = y[:, :, :HW]
    return y.reshape(B, Cout, H, W)


def _reference(x_nchw, weights, biases, *, w0=1.0, w0_initial=30.0, bf16_hidden=False):
    """Pure-JAX reference replicating the torch forward.

    bf16_hidden=False -> exact-f32 (HIGHEST) reference of the module's math.
    bf16_hidden=True  -> mirrors the kernel's matmul numerics (bf16 MXU for
                         layers with fan-in > _VPU_K_MAX, exact f32 otherwise).
    """
    L = len(weights)
    sine_w0 = [float(w0_initial)] + [float(w0)] * (L - 2)
    h = jnp.transpose(x_nchw, (0, 3, 2, 1)).astype(jnp.float32)
    for l, (wgt, b) in enumerate(zip(weights, biases)):
        d_in = wgt.shape[0]
        if (not bf16_hidden) or d_in <= _VPU_K_MAX:
            h = jnp.dot(h, wgt, precision=jax.lax.Precision.HIGHEST,
                        preferred_element_type=jnp.float32) + b
        else:
            h = jnp.dot(h.astype(jnp.bfloat16), wgt.astype(jnp.bfloat16),
                        preferred_element_type=jnp.float32) + b
        if l < L - 1:
            h = jnp.sin(sine_w0[l] * h)
    h = jnp.transpose(h, (0, 3, 2, 1))
    return jnp.tanh(h)


if __name__ == "__main__":
    # Module config (small): layers=[32, 32], in_features=4, out_features=3
    B, Cin, Hs, Ws = 2, 4, 16, 16
    layers = [32, 32]
    Cout = 3
    w0, w0_initial, c = 1.0, 30.0, 6.0

    dims = [Cin] + layers + [Cout]          # 3 Linear layers total
    key = jax.random.PRNGKey(0)
    keys = jax.random.split(key, 2 * (len(dims) - 1) + 1)

    weights, biases = [], []
    kidx = 0
    for din, dout in zip(dims[:-1], dims[1:]):
        # siren_uniform_: bound = sqrt(c / fan_in), applied to Linear weights.
        bound_w = math.sqrt(c / din)
        wgt = jax.random.uniform(keys[kidx], (din, dout), jnp.float32,
                                 minval=-bound_w, maxval=bound_w)
        kidx += 1
        # torch nn.Linear default bias init: U(-1/sqrt(fan_in), 1/sqrt(fan_in))
        bound_b = 1.0 / math.sqrt(din)
        b = jax.random.uniform(keys[kidx], (dout,), jnp.float32,
                               minval=-bound_b, maxval=bound_b)
        kidx += 1
        weights.append(wgt)
        biases.append(b)

    x = jax.random.normal(keys[kidx], (B, Cin, Hs, Ws), dtype=jnp.float32)

    out = siren_pallas(x, weights, biases, w0=w0, w0_initial=w0_initial)
    out = jax.block_until_ready(out)
    assert out.shape == (B, Cout, Hs, Ws), out.shape

    # (1) Check against a reference using the same matmul numerics as the kernel.
    ref_bf16 = _reference(x, weights, biases, w0=w0, w0_initial=w0_initial,
                          bf16_hidden=True)
    if not jnp.allclose(out, ref_bf16, atol=1e-2, rtol=1e-2):
        max_err = float(jnp.max(jnp.abs(out - ref_bf16)))
        raise AssertionError(f"mismatch vs bf16-matmul reference, max abs err = {max_err}")

    # (2) Sanity check against the exact-f32 module math (bf16 hidden matmuls
    #     bound the end-to-end error; w0=30 layer is exact in the kernel).
    ref_f32 = _reference(x, weights, biases, w0=w0, w0_initial=w0_initial,
                         bf16_hidden=False)
    if not jnp.allclose(out, ref_f32, atol=5e-2, rtol=5e-2):
        max_err = float(jnp.max(jnp.abs(out - ref_f32)))
        raise AssertionError(f"mismatch vs f32 reference, max abs err = {max_err}")

    print("KERNEL_OK")
</pallas_src>

<mosaic_0001>
module attributes {stable_mosaic.version = 11 : i64} {
  func.func @kernel(%arg0: i32, %arg1: i32, %arg2: memref<1x4x256xf32, #tpu.memory_space<vmem>>, %arg3: memref<32x4xf32, #tpu.memory_space<vmem>>, %arg4: memref<32x1xf32, #tpu.memory_space<vmem>>, %arg5: memref<32x32xbf16, #tpu.memory_space<vmem>>, %arg6: memref<32x1xf32, #tpu.memory_space<vmem>>, %arg7: memref<3x32xbf16, #tpu.memory_space<vmem>>, %arg8: memref<3x1xf32, #tpu.memory_space<vmem>>, %arg9: memref<1x3x256xf32, #tpu.memory_space<vmem>>) attributes {dimension_semantics = [#tpu.dimension_semantics<parallel>, #tpu.dimension_semantics<parallel>], iteration_bounds = array<i64: 2, 1>, scalar_prefetch = 0 : i64, scratch_operands = 0 : i64, tpu.core_type = #tpu.core_type<tc>, window_params = [{transform_indices = @transform_0, window_bounds = array<i64: 1, 4, 256>}, {pipeline_mode = #tpu.pipeline_mode<synchronous>, transform_indices = @transform_1, window_bounds = array<i64: 32, 4>}, {pipeline_mode = #tpu.pipeline_mode<synchronous>, transform_indices = @transform_2, window_bounds = array<i64: 32, 1>}, {pipeline_mode = #tpu.pipeline_mode<synchronous>, transform_indices = @transform_3, window_bounds = array<i64: 32, 32>}, {pipeline_mode = #tpu.pipeline_mode<synchronous>, transform_indices = @transform_4, window_bounds = array<i64: 32, 1>}, {pipeline_mode = #tpu.pipeline_mode<synchronous>, transform_indices = @transform_5, window_bounds = array<i64: 3, 32>}, {pipeline_mode = #tpu.pipeline_mode<synchronous>, transform_indices = @transform_6, window_bounds = array<i64: 3, 1>}, {transform_indices = @transform_7, window_bounds = array<i64: 1, 3, 256>}]} {
    %c0 = arith.constant 0 : index
    %c0_0 = arith.constant 0 : index
    %c0_1 = arith.constant 0 : index
    %0 = vector.load %arg2[%c0, %c0_0, %c0_1] : memref<1x4x256xf32, #tpu.memory_space<vmem>>, vector<1x4x256xf32>
    %1 = vector.shape_cast %0 : vector<1x4x256xf32> to vector<4x256xf32>
    %c0_2 = arith.constant 0 : index
    %c0_3 = arith.constant 0 : index
    %2 = vector.load %arg3[%c0_2, %c0_3] : memref<32x4xf32, #tpu.memory_space<vmem>>, vector<32x4xf32>
    %c0_4 = arith.constant 0 : index
    %c0_5 = arith.constant 0 : index
    %3 = vector.load %arg4[%c0_4, %c0_5] : memref<32x1xf32, #tpu.memory_space<vmem>>, vector<32x1xf32>
    %4 = vector.extract_strided_slice %2 {offsets = [0, 0], sizes = [32, 1], strides = [1, 1]} : vector<32x4xf32> to vector<32x1xf32>
    %5 = vector.extract_strided_slice %1 {offsets = [0, 0], sizes = [1, 256], strides = [1, 1]} : vector<4x256xf32> to vector<1x256xf32>
    %6 = vector.broadcast %4 : vector<32x1xf32> to vector<32x256xf32>
    %7 = vector.broadcast %5 : vector<1x256xf32> to vector<32x256xf32>
    %8 = arith.mulf %6, %7 : vector<32x256xf32>
    %9 = vector.extract_strided_slice %2 {offsets = [0, 1], sizes = [32, 1], strides = [1, 1]} : vector<32x4xf32> to vector<32x1xf32>
    %10 = vector.extract_strided_slice %1 {offsets = [1, 0], sizes = [1, 256], strides = [1, 1]} : vector<4x256xf32> to vector<1x256xf32>
    %11 = vector.broadcast %9 : vector<32x1xf32> to vector<32x256xf32>
    %12 = vector.broadcast %10 : vector<1x256xf32> to vector<32x256xf32>
    %13 = arith.mulf %11, %12 : vector<32x256xf32>
    %14 = arith.addf %8, %13 : vector<32x256xf32>
    %15 = vector.extract_strided_slice %2 {offsets = [0, 2], sizes = [32, 1], strides = [1, 1]} : vector<32x4xf32> to vector<32x1xf32>
    %16 = vector.extract_strided_slice %1 {offsets = [2, 0], sizes = [1, 256], strides = [1, 1]} : vector<4x256xf32> to vector<1x256xf32>
    %17 = vector.broadcast %15 : vector<32x1xf32> to vector<32x256xf32>
    %18 = vector.broadcast %16 : vector<1x256xf32> to vector<32x256xf32>
    %19 = arith.mulf %17, %18 : vector<32x256xf32>
    %20 = arith.addf %14, %19 : vector<32x256xf32>
    %21 = vector.extract_strided_slice %2 {offsets = [0, 3], sizes = [32, 1], strides = [1, 1]} : vector<32x4xf32> to vector<32x1xf32>
    %22 = vector.extract_strided_slice %1 {offsets = [3, 0], sizes = [1, 256], strides = [1, 1]} : vector<4x256xf32> to vector<1x256xf32>
    %23 = vector.broadcast %21 : vector<32x1xf32> to vector<32x256xf32>
    %24 = vector.broadcast %22 : vector<1x256xf32> to vector<32x256xf32>
    %25 = arith.mulf %23, %24 : vector<32x256xf32>
    %26 = arith.addf %20, %25 : vector<32x256xf32>
    %27 = vector.broadcast %3 : vector<32x1xf32> to vector<32x256xf32>
    %28 = arith.addf %26, %27 : vector<32x256xf32>
    %cst = arith.constant 3.000000e+01 : f32
    %29 = vector.broadcast %cst : f32 to vector<32x256xf32>
    %30 = arith.mulf %29, %28 : vector<32x256xf32>
    %31 = math.sin %30 : vector<32x256xf32>
    %c0_6 = arith.constant 0 : index
    %c0_7 = arith.constant 0 : index
    %32 = vector.load %arg5[%c0_6, %c0_7] : memref<32x32xbf16, #tpu.memory_space<vmem>>, vector<32x32xbf16>
    %c0_8 = arith.constant 0 : index
    %c0_9 = arith.constant 0 : index
    %33 = vector.load %arg6[%c0_8, %c0_9] : memref<32x1xf32, #tpu.memory_space<vmem>>, vector<32x1xf32>
    %34 = arith.truncf %31 : vector<32x256xf32> to vector<32x256xbf16>
    %cst_10 = arith.constant dense<0.000000e+00> : vector<32x256xf32>
    %35 = tpu.matmul %32, %34, %cst_10 {dimension_numbers = #tpu.dot_dimension_numbers<[1], [0], [0], [1], [0, 0, 1, 1], [], []>} : vector<32x32xbf16>, vector<32x256xbf16>, vector<32x256xf32> -> vector<32x256xf32>
    %36 = vector.broadcast %33 : vector<32x1xf32> to vector<32x256xf32>
    %37 = arith.addf %35, %36 : vector<32x256xf32>
    %cst_11 = arith.constant 1.000000e+00 : f32
    %38 = vector.broadcast %cst_11 : f32 to vector<32x256xf32>
    %39 = arith.mulf %38, %37 : vector<32x256xf32>
    %40 = math.sin %39 : vector<32x256xf32>
    %c0_12 = arith.constant 0 : index
    %c0_13 = arith.constant 0 : index
    %41 = vector.load %arg7[%c0_12, %c0_13] : memref<3x32xbf16, #tpu.memory_space<vmem>>, vector<3x32xbf16>
    %c0_14 = arith.constant 0 : index
    %c0_15 = arith.constant 0 : index
    %42 = vector.load %arg8[%c0_14, %c0_15] : memref<3x1xf32, #tpu.memory_space<vmem>>, vector<3x1xf32>
    %43 = arith.truncf %40 : vector<32x256xf32> to vector<32x256xbf16>
    %cst_16 = arith.constant dense<0.000000e+00> : vector<3x256xf32>
    %44 = tpu.matmul %41, %43, %cst_16 {dimension_numbers = #tpu.dot_dimension_numbers<[1], [0], [0], [1], [0, 0, 1, 1], [], []>} : vector<3x32xbf16>, vector<32x256xbf16>, vector<3x256xf32> -> vector<3x256xf32>
    %45 = vector.broadcast %42 : vector<3x1xf32> to vector<3x256xf32>
    %46 = arith.addf %44, %45 : vector<3x256xf32>
    %47 = math.tanh %46 : vector<3x256xf32>
    %c0_17 = arith.constant 0 : index
    %c0_18 = arith.constant 0 : index
    %c0_19 = arith.constant 0 : index
    %48 = vector.load %arg9[%c0_17, %c0_18, %c0_19] : memref<1x3x256xf32, #tpu.memory_space<vmem>>, vector<1x3x256xf32>
    %49 = vector.shape_cast %48 : vector<1x3x256xf32> to vector<3x256xf32>
    %50 = vector.shape_cast %47 : vector<3x256xf32> to vector<1x3x256xf32>
    tpu.vector_store %arg9[%c0_17, %c0_18, %c0_19], %50 {strides = array<i32>} : memref<1x3x256xf32, #tpu.memory_space<vmem>>, vector<1x3x256xf32>,
    return
  }
  func.func @transform_0(%arg0: i32, %arg1: i32) -> (i32, i32, i32) {
    %c0_i32 = arith.constant 0 : i32
    %c0_i32_0 = arith.constant 0 : i32
    return %arg0, %c0_i32, %arg1 : i32, i32, i32
  }
  func.func @transform_1(%arg0: i32, %arg1: i32) -> (i32, i32) {
    %c0_i32 = arith.constant 0 : i32
    %c0_i32_0 = arith.constant 0 : i32
    %c0_i32_1 = arith.constant 0 : i32
    return %c0_i32, %c0_i32_0 : i32, i32
  }
  func.func @transform_2(%arg0: i32, %arg1: i32) -> (i32, i32) {
    %c0_i32 = arith.constant 0 : i32
    %c0_i32_0 = arith.constant 0 : i32
    %c0_i32_1 = arith.constant 0 : i32
    return %c0_i32, %c0_i32_0 : i32, i32
  }
  func.func @transform_3(%arg0: i32, %arg1: i32) -> (i32, i32) {
    %c0_i32 = arith.constant 0 : i32
    %c0_i32_0 = arith.constant 0 : i32
    %c0_i32_1 = arith.constant 0 : i32
    return %c0_i32, %c0_i32_0 : i32, i32
  }
  func.func @transform_4(%arg0: i32, %arg1: i32) -> (i32, i32) {
    %c0_i32 = arith.constant 0 : i32
    %c0_i32_0 = arith.constant 0 : i32
    %c0_i32_1 = arith.constant 0 : i32
    return %c0_i32, %c0_i32_0 : i32, i32
  }
  func.func @transform_5(%arg0: i32, %arg1: i32) -> (i32, i32) {
    %c0_i32 = arith.constant 0 : i32
    %c0_i32_0 = arith.constant 0 : i32
    %c0_i32_1 = arith.constant 0 : i32
    return %c0_i32, %c0_i32_0 : i32, i32
  }
  func.func @transform_6(%arg0: i32, %arg1: i32) -> (i32, i32) {
    %c0_i32 = arith.constant 0 : i32
    %c0_i32_0 = arith.constant 0 : i32
    %c0_i32_1 = arith.constant 0 : i32
    return %c0_i32, %c0_i32_0 : i32, i32
  }
  func.func @transform_7(%arg0: i32, %arg1: i32) -> (i32, i32, i32) {
    %c0_i32 = arith.constant 0 : i32
    %c0_i32_0 = arith.constant 0 : i32
    return %arg0, %c0_i32, %arg1 : i32, i32, i32
  }
}

</mosaic_0001>

<llo_original>
// kernel: tpu_custom_call.1
$region0: #{tpu_custom_call.1}
  #allocation0 [shape = 'u32[]', space=smem, size = 0x4, offset = 0x4, fixed_abs, tag = 'smem constant byte address 0x4 - core index']
  #allocation1 [shape = 'u32[144,128]{1,0:T(1,128)}', space=vmem, size = 0x12000, scoped, tag = 'internal scratch']
  %s0 = inlined_call_operand.vmem [shape: f32[2,4,256], index: 0, kind: input, shape index: {}]
  %s1 = inlined_call_operand.vmem [shape: f32[32,4], index: 1, kind: input, shape index: {}]
  %s2 = inlined_call_operand.vmem [shape: f32[32,1], index: 2, kind: input, shape index: {}]
  %s3 = inlined_call_operand.vmem [shape: bf16[32,32], index: 3, kind: input, shape index: {}]
  %s4 = inlined_call_operand.vmem [shape: f32[32,1], index: 4, kind: input, shape index: {}]
  %s5 = inlined_call_operand.vmem [shape: bf16[3,32], index: 5, kind: input, shape index: {}]
  %s6 = inlined_call_operand.vmem [shape: f32[3,1], index: 6, kind: input, shape index: {}]
  %s7 = inlined_call_operand.vmem [shape: f32[2,3,256], index: 7, kind: output, shape index: {}]
  %s8 = sld [smem:[#allocation0]]
  $region61: #{tpu_custom_call.1} parent=0
    _
  %s10 = ssub.s32 1, %s8
  %s11 = scalar_select 0, %s10, %s8
  loop: start=0, step=1, limit=4
  $region2: #{tpu_custom_call.1} parent=0 // loop_pre_header
    _
  $region3: #{tpu_custom_call.1} parent=0 // loop_header
    %s13 = sphi 0, %s17
    %p14 = scmp.ge.s32.totalorder %s13, 4
    %s20 = sphi 0, %s32
    %s21 = sphi 0, %s28
    %s22 = sphi 0, %s20
    %s23 = sphi 0, %s21
    %s24 = sphi 0, %s22
    %s25 = sphi 0, %s23
    %s37 = sphi 0, %s39
    %s40 = sphi 0, %s37
    %s41 = sphi 0, %s40
    %s57 = sphi 0, %s41
    %s61 = sphi 0, %s61
    %s63 = sphi 0, %s61
    %s64 = sphi 0, %s63
    %s78 = sphi 0, %s64
    %s82 = sphi 0, %s82
    %s84 = sphi 0, %s82
    %s85 = sphi 0, %s84
    %s99 = sphi 0, %s85
    %s103 = sphi 0, %s103
    %s105 = sphi 0, %s103
    %s106 = sphi 0, %s105
    %s120 = sphi 0, %s106
    %s124 = sphi 0, %s124
    %s126 = sphi 0, %s124
    %s127 = sphi 0, %s126
    %s141 = sphi 0, %s127
    %s145 = sphi 0, %s145
    %s147 = sphi 0, %s145
    %s148 = sphi 0, %s147
    %s162 = sphi 0, %s148
    %s166 = sphi 0, %s166
    %s168 = sphi 0, %s166
    %s169 = sphi 0, %s168
    %s183 = sphi 0, %s169
    %s191 = sphi 0, %s193
    %s194 = sphi 0, %s191
    %s195 = sphi 0, %s194
    %s211 = sphi 0, %s195
  $region4: #{tpu_custom_call.1} parent=0 // loop_header_branch
    %16 = sbr.rel (%p14) target = $region8
  $region5: #{tpu_custom_call.1} parent=0 // loop_body
    %s18 = ssub.s32 %s13, 1
    %s19 = ssub.s32 %s13, 2
    %s26 = sadd.s32 1, %s21
    %p27 = scmp.ge.s32.totalorder %s26, 1
    %s28 = scalar_select %p27, 0, %s26
    %s29 = sadd.s32 1, %s20
    %s30 = scalar_select %p27, %s29, %s20
    %p31 = scmp.ge.s32.totalorder %s30, 2
    %s32 = scalar_select %p31, 0, %s30
    %s33 = ssub.s32 %s20, %s32
    %s34 = ssub.s32 %s21, %s28
    %s35 = sor.u32 %s33, %s34
    %p36 = scmp.eq.s32.totalorder %s35, 0
    %s38 = sadd.s32 %s37, 1
    %s39 = scalar_select %p36, %s37, %s38
    %p42 = pneg %p36
    %p43 = scmp.eq.s32.totalorder %s13, 1
    %p44 = por %p42, %p43
    %p45 = scmp.ne.s32.totalorder %s37, %s40
    %p46 = scmp.eq.s32.totalorder %s13, 0
    %p47 = por %p45, %p46
    %p48 = scmp.ne.s32.totalorder %s37, %s40
    %p49 = scmp.eq.s32.totalorder %s18, 1
    %p50 = por %p48, %p49
    %p51 = scmp.ne.s32.totalorder %s40, %s41
    %p52 = scmp.eq.s32.totalorder %s18, 0
    %p53 = por %p51, %p52
    %p54 = scmp.ne.s32.totalorder %s40, %s41
    %p55 = scmp.eq.s32.totalorder %s19, 1
    %p56 = por %p54, %p55
    %p58 = scmp.ne.s32.totalorder %s41, %s57
    %p59 = scmp.eq.s32.totalorder %s19, 0
    %p60 = por %p58, %p59
    %s62 = sadd.s32 %s61, 1
    %p65 = scmp.eq.s32.totalorder %s13, 1
    %p66 = scmp.ne.s32.totalorder %s61, %s63
    %p67 = scmp.eq.s32.totalorder %s13, 0
    %p68 = por %p66, %p67
    %p69 = scmp.ne.s32.totalorder %s61, %s63
    %p70 = scmp.eq.s32.totalorder %s18, 1
    %p71 = por %p69, %p70
    %p72 = scmp.ne.s32.totalorder %s63, %s64
    %p73 = scmp.eq.s32.totalorder %s18, 0
    %p74 = por %p72, %p73
    %p75 = scmp.ne.s32.totalorder %s63, %s64
    %p76 = scmp.eq.s32.totalorder %s19, 1
    %p77 = por %p75, %p76
    %p79 = scmp.ne.s32.totalorder %s64, %s78
    %p80 = scmp.eq.s32.totalorder %s19, 0
    %p81 = por %p79, %p80
    %s83 = sadd.s32 %s82, 1
    %p86 = scmp.eq.s32.totalorder %s13, 1
    %p87 = scmp.ne.s32.totalorder %s82, %s84
    %p88 = scmp.eq.s32.totalorder %s13, 0
    %p89 = por %p87, %p88
    %p90 = scmp.ne.s32.totalorder %s82, %s84
    %p91 = scmp.eq.s32.totalorder %s18, 1
    %p92 = por %p90, %p91
    %p93 = scmp.ne.s32.totalorder %s84, %s85
    %p94 = scmp.eq.s32.totalorder %s18, 0
    %p95 = por %p93, %p94
    %p96 = scmp.ne.s32.totalorder %s84, %s85
    %p97 = scmp.eq.s32.totalorder %s19, 1
    %p98 = por %p96, %p97
    %p100 = scmp.ne.s32.totalorder %s85, %s99
    %p101 = scmp.eq.s32.totalorder %s19, 0
    %p102 = por %p100, %p101
    %s104 = sadd.s32 %s103, 1
    %p107 = scmp.eq.s32.totalorder %s13, 1
    %p108 = scmp.ne.s32.totalorder %s103, %s105
    %p109 = scmp.eq.s32.totalorder %s13, 0
    %p110 = por %p108, %p109
    %p111 = scmp.ne.s32.totalorder %s103, %s105
    %p112 = scmp.eq.s32.totalorder %s18, 1
    %p113 = por %p111, %p112
    %p114 = scmp.ne.s32.totalorder %s105, %s106
    %p115 = scmp.eq.s32.totalorder %s18, 0
    %p116 = por %p114, %p115
    %p117 = scmp.ne.s32.totalorder %s105, %s106
    %p118 = scmp.eq.s32.totalorder %s19, 1
    %p119 = por %p117, %p118
    %p121 = scmp.ne.s32.totalorder %s106, %s120
    %p122 = scmp.eq.s32.totalorder %s19, 0
    %p123 = por %p121, %p122
    %s125 = sadd.s32 %s124, 1
    %p128 = scmp.eq.s32.totalorder %s13, 1
    %p129 = scmp.ne.s32.totalorder %s124, %s126
    %p130 = scmp.eq.s32.totalorder %s13, 0
    %p131 = por %p129, %p130
    %p132 = scmp.ne.s32.totalorder %s124, %s126
    %p133 = scmp.eq.s32.totalorder %s18, 1
    %p134 = por %p132, %p133
    %p135 = scmp.ne.s32.totalorder %s126, %s127
    %p136 = scmp.eq.s32.totalorder %s18, 0
    %p137 = por %p135, %p136
    %p138 = scmp.ne.s32.totalorder %s126, %s127
    %p139 = scmp.eq.s32.totalorder %s19, 1
    %p140 = por %p138, %p139
    %p142 = scmp.ne.s32.totalorder %s127, %s141
    %p143 = scmp.eq.s32.totalorder %s19, 0
    %p144 = por %p142, %p143
    %s146 = sadd.s32 %s145, 1
    %p149 = scmp.eq.s32.totalorder %s13, 1
    %p150 = scmp.ne.s32.totalorder %s145, %s147
    %p151 = scmp.eq.s32.totalorder %s13, 0
    %p152 = por %p150, %p151
    %p153 = scmp.ne.s32.totalorder %s145, %s147
    %p154 = scmp.eq.s32.totalorder %s18, 1
    %p155 = por %p153, %p154
    %p156 = scmp.ne.s32.totalorder %s147, %s148
    %p157 = scmp.eq.s32.totalorder %s18, 0
    %p158 = por %p156, %p157
    %p159 = scmp.ne.s32.totalorder %s147, %s148
    %p160 = scmp.eq.s32.totalorder %s19, 1
    %p161 = por %p159, %p160
    %p163 = scmp.ne.s32.totalorder %s148, %s162
    %p164 = scmp.eq.s32.totalorder %s19, 0
    %p165 = por %p163, %p164
    %s167 = sadd.s32 %s166, 1
    %p170 = scmp.eq.s32.totalorder %s13, 1
    %p171 = scmp.ne.s32.totalorder %s166, %s168
    %p172 = scmp.eq.s32.totalorder %s13, 0
    %p173 = por %p171, %p172
    %p174 = scmp.ne.s32.totalorder %s166, %s168
    %p175 = scmp.eq.s32.totalorder %s18, 1
    %p176 = por %p174, %p175
    %p177 = scmp.ne.s32.totalorder %s168, %s169
    %p178 = scmp.eq.s32.totalorder %s18, 0
    %p179 = por %p177, %p178
    %p180 = scmp.ne.s32.totalorder %s168, %s169
    %p181 = scmp.eq.s32.totalorder %s19, 1
    %p182 = por %p180, %p181
    %p184 = scmp.ne.s32.totalorder %s169, %s183
    %p185 = scmp.eq.s32.totalorder %s19, 0
    %p186 = por %p184, %p185
    %s187 = ssub.s32 %s20, %s32
    %s188 = ssub.s32 %s21, %s28
    %s189 = sor.u32 %s187, %s188
    %p190 = scmp.eq.s32.totalorder %s189, 0
    %s192 = sadd.s32 %s191, 1
    %s193 = scalar_select %p190, %s191, %s192
    %p196 = pneg %p190
    %p197 = scmp.eq.s32.totalorder %s13, 1
    %p198 = por %p196, %p197
    %p199 = scmp.ne.s32.totalorder %s191, %s194
    %p200 = scmp.eq.s32.totalorder %s13, 0
    %p201 = por %p199, %p200
    %p202 = scmp.ne.s32.totalorder %s191, %s194
    %p203 = scmp.eq.s32.totalorder %s18, 1
    %p204 = por %p202, %p203
    %p205 = scmp.ne.s32.totalorder %s194, %s195
    %p206 = scmp.eq.s32.totalorder %s18, 0
    %p207 = por %p205, %p206
    %p208 = scmp.ne.s32.totalorder %s194, %s195
    %p209 = scmp.eq.s32.totalorder %s19, 1
    %p210 = por %p208, %p209
    %p212 = scmp.ne.s32.totalorder %s195, %s211
    %p213 = scmp.eq.s32.totalorder %s19, 0
    %p214 = por %p212, %p213
    %p215 = scmp.le.s32.totalorder 1, %s13
    %p216 = scmp.lt.s32.totalorder %s13, 3
    %p217 = pnand %p215, %p216
    %p218 = pneg %p217
    // Predicated region
    $region9: #{tpu_custom_call.1} parent=5 // pred_check
      _
    $region10: #{tpu_custom_call.1} parent=5 // pred_check_branch
      %220 = sbr.rel (%p217) target = $region12
    $region11: #{tpu_custom_call.1} parent=5 // pred_region
      %s221 = ssub.s32 %s13, 1
      // Predicated region
      $region13: #{tpu_custom_call.1} parent=11 // pred_check
        %p222 = pneg %p74
      $region14: #{tpu_custom_call.1} parent=11 // pred_check_branch
        %224 = sbr.rel (%p222) target = $region16
      $region15: #{tpu_custom_call.1} parent=11 // pred_region
        _
      $region16: #{tpu_custom_call.1} parent=11 // pred_fallthru
        _
      // Predicated region
      $region17: #{tpu_custom_call.1} parent=11 // pred_check
        %p225 = pneg %p95
      $region18: #{tpu_custom_call.1} parent=11 // pred_check_branch
        %227 = sbr.rel (%p225) target = $region20
      $region19: #{tpu_custom_call.1} parent=11 // pred_region
        _
      $region20: #{tpu_custom_call.1} parent=11 // pred_fallthru
        _
      // Predicated region
      $region21: #{tpu_custom_call.1} parent=11 // pred_check
        %p228 = pneg %p116
      $region22: #{tpu_custom_call.1} parent=11 // pred_check_branch
        %230 = sbr.rel (%p228) target = $region24
      $region23: #{tpu_custom_call.1} parent=11 // pred_region
        _
      $region24: #{tpu_custom_call.1} parent=11 // pred_fallthru
        _
      // Predicated region
      $region25: #{tpu_custom_call.1} parent=11 // pred_check
        %p231 = pneg %p137
      $region26: #{tpu_custom_call.1} parent=11 // pred_check_branch
        %233 = sbr.rel (%p231) target = $region28
      $region27: #{tpu_custom_call.1} parent=11 // pred_region
        _
      $region28: #{tpu_custom_call.1} parent=11 // pred_fallthru
        _
      // Predicated region
      $region29: #{tpu_custom_call.1} parent=11 // pred_check
        %p234 = pneg %p158
      $region30: #{tpu_custom_call.1} parent=11 // pred_check_branch
        %236 = sbr.rel (%p234) target = $region32
      $region31: #{tpu_custom_call.1} parent=11 // pred_region
        _
      $region32: #{tpu_custom_call.1} parent=11 // pred_fallthru
        _
      // Predicated region
      $region33: #{tpu_custom_call.1} parent=11 // pred_check
        %p237 = pneg %p179
      $region34: #{tpu_custom_call.1} parent=11 // pred_check_branch
        %239 = sbr.rel (%p237) target = $region36
      $region35: #{tpu_custom_call.1} parent=11 // pred_region
        _
      $region36: #{tpu_custom_call.1} parent=11 // pred_fallthru
        _
    $region12: #{tpu_custom_call.1} parent=5 // pred_fallthru
      _
    %p240 = scmp.lt.s32.totalorder %s13, 2
    // Predicated region
    $region37: #{tpu_custom_call.1} parent=5 // pred_check
      %p241 = pneg %p240
    $region38: #{tpu_custom_call.1} parent=5 // pred_check_branch
      %243 = sbr.rel (%p241) target = $region40
    $region39: #{tpu_custom_call.1} parent=5 // pred_region
      // Predicated region
      $region41: #{tpu_custom_call.1} parent=39 // pred_check
        %p244 = pneg %p47
      $region42: #{tpu_custom_call.1} parent=39 // pred_check_branch
        %246 = sbr.rel (%p244) target = $region44
      $region43: #{tpu_custom_call.1} parent=39 // pred_region
        %s247 = smul.u32 2, %s21
        %p248 = scmp.lt.s32.totalorder %s20, 1
        %s249 = scalar_select %p248, %s20, 1
        %p250 = scmp.lt.s32.totalorder %s247, 1
        %s251 = scalar_select %p250, %s247, 1
        %s252 = smul.addr %s249, 2
        %s253 = sadd.s32 %s251, %s252
        %s254 = smul.addr %s253, 4
        %s255 = scalar_lea.vmem %s0, %s254
        %s256 = smul.u32 2, %s21
      $region44: #{tpu_custom_call.1} parent=39 // pred_fallthru
        _
    $region40: #{tpu_custom_call.1} parent=5 // pred_fallthru
      _
    %p257 = scmp.le.s32.totalorder 1, %s13
    %p258 = scmp.lt.s32.totalorder %s13, 3
    %p259 = pnand %p257, %p258
    %p260 = pneg %p259
    // Predicated region
    $region45: #{tpu_custom_call.1} parent=5 // pred_check
      _
    $region46: #{tpu_custom_call.1} parent=5 // pred_check_branch
      %262 = sbr.rel (%p259) target = $region48
    $region47: #{tpu_custom_call.1} parent=5 // pred_region
      %s263 = ssub.s32 %s13, 1
      %s264 = smul.u32 2, %s23
      %p265 = scmp.lt.s32.totalorder %s22, 1
      %s266 = scalar_select %p265, %s22, 1
      %p267 = scmp.lt.s32.totalorder %s264, 1
      %s268 = scalar_select %p267, %s264, 1
      %s269 = smul.addr %s266, 2
      %s270 = sadd.s32 %s268, %s269
      %s271 = smul.addr %s270, 4
      %s272 = scalar_lea.vmem %s0, %s271
      %p273 = pneg %p53
      %p274 = pneg %p50
      %p275 = pneg %p74
      %p276 = pneg %p71
      %p277 = pneg %p95
      %p278 = pneg %p92
      %p279 = pneg %p116
      %p280 = pneg %p113
      %p281 = pneg %p137
      %p282 = pneg %p134
      %p283 = pneg %p158
      %p284 = pneg %p155
      %p285 = pneg %p179
      %p286 = pneg %p176
      %p287 = pneg %p207
      %p288 = pneg %p204
      %s289 = smul.u32 2, %s23
      %p290 = scmp.lt.s32.totalorder %s22, 1
      %s291 = scalar_select %p290, %s22, 1
      %p292 = scmp.lt.s32.totalorder %s289, 1
      %s293 = scalar_select %p292, %s289, 1
      %s294 = smul.addr %s291, 2
      %s295 = sadd.s32 %s293, %s294
      %s296 = smul.addr %s295, 4
      %s297 = scalar_lea.vmem %s7, %s296
      %s298 = smul.u32 2, %s23
      %p299 = scmp.lt.s32.totalorder %s22, 1
      %s300 = scalar_select %p299, %s22, 1
      %p301 = scmp.lt.s32.totalorder %s298, 1
      %s302 = scalar_select %p301, %s298, 1
      %s303 = smul.addr %s300, 2
      %s304 = sadd.s32 %s302, %s303
      %s305 = smul.addr %s304, 4
      %s306 = scalar_lea.vmem %s0, %s305
      %s307 = smul.u32 2, %s23
      %s308 = smul.u32 2, %s23
      %p309 = scmp.lt.s32.totalorder %s22, 1
      %s310 = scalar_select %p309, %s22, 1
      %p311 = scmp.lt.s32.totalorder %s308, 1
      %s312 = scalar_select %p311, %s308, 1
      %s313 = smul.addr %s310, 2
      %s314 = sadd.s32 %s312, %s313
      %s315 = smul.addr %s314, 4
      %s316 = scalar_lea.vmem %s7, %s315
      %s317 = smul.u32 2, %s23
      %v319 = vld [vmem:[%s306] sm:$0xff]
      %v320 = vld [vmem:[%s1] sm:$0xff]
      %v321 = vld [vmem:[%s1 + $0x8] sm:$0xff]
      %v322 = vld [vmem:[%s1 + $0x10] sm:$0xff]
      %v323 = vld [vmem:[%s1 + $0x18] sm:$0xff]
      %v324 = vld [vmem:[%s2] sm:$0xff]
      %v325 = vld [vmem:[%s2 + $0x8] sm:$0xff]
      %v326 = vld [vmem:[%s2 + $0x10] sm:$0xff]
      %v327 = vld [vmem:[%s2 + $0x18] sm:$0xff]
      %329 = vset.pattern.permute.xlu0 0
      %330 = vperm.xlu0 %329, %v320
      %v331 = vpop.permute.xlu0 %330
      %334 = vset.pattern.permute.xlu0 0
      %335 = vperm.xlu0 %334, %v321
      %v336 = vpop.permute.xlu0 %335
      %339 = vset.pattern.permute.xlu0 0
      %340 = vperm.xlu0 %339, %v322
      %v341 = vpop.permute.xlu0 %340
      %344 = vset.pattern.permute.xlu0 0
      %345 = vperm.xlu0 %344, %v323
      %v346 = vpop.permute.xlu0 %345
      %v349 = vlaneseq
      %v350 = vshrl.u32 %v349, 7
      %v351 = vsub.s32 0, %v350
      %v352 = vrot.slane %v319, %v351
      %v353 = vlaneseq
      %v354 = vshrl.u32 %v353, 7
      %v355 = vsub.s32 4, %v354
      %v356 = vrot.slane %v319, %v355
      %v359 = vlaneseq
      %v360 = vshrl.u32 %v359, 7
      %v361 = vsub.s32 0, %v360
      %v362 = vrot.slane %v352, %v361
      %v363 = vlaneseq
      %v364 = vshrl.u32 %v363, 7
      %v365 = vsub.s32 0, %v364
      %v366 = vrot.slane %v356, %v365
      %v367 = vmul.f32 %v331, %v362
      %v368 = vmul.f32 %v331, %v366
      %v369 = vmul.f32 %v336, %v362
      %v370 = vmul.f32 %v336, %v366
      %v371 = vmul.f32 %v341, %v362
      %v372 = vmul.f32 %v341, %v366
      %v373 = vmul.f32 %v346, %v362
      %v374 = vmul.f32 %v346, %v366
      %375 = vset.pattern.permute.xlu0 1
      %376 = vperm.xlu0 %375, %v320
      %v377 = vpop.permute.xlu0 %376
      %379 = vset.pattern.permute.xlu0 1
      %380 = vperm.xlu0 %379, %v321
      %v381 = vpop.permute.xlu0 %380
      %383 = vset.pattern.permute.xlu0 1
      %384 = vperm.xlu0 %383, %v322
      %v385 = vpop.permute.xlu0 %384
      %387 = vset.pattern.permute.xlu0 1
      %388 = vperm.xlu0 %387, %v323
      %v389 = vpop.permute.xlu0 %388
      %v391 = vlaneseq
      %v392 = vshrl.u32 %v391, 7
      %v393 = vsub.s32 1, %v392
      %v394 = vrot.slane %v319, %v393
      %v395 = vlaneseq
      %v396 = vshrl.u32 %v395, 7
      %v397 = vsub.s32 5, %v396
      %v398 = vrot.slane %v319, %v397
      %v401 = vlaneseq
      %v402 = vshrl.u32 %v401, 7
      %v403 = vsub.s32 1, %v402
      %v404 = vrot.slane %v394, %v403
      %v405 = vlaneseq
      %v406 = vshrl.u32 %v405, 7
      %v407 = vsub.s32 1, %v406
      %v408 = vrot.slane %v398, %v407
      %v409 = vmul.f32 %v377, %v404
      %v410 = vmul.f32 %v377, %v408
      %v411 = vmul.f32 %v381, %v404
      %v412 = vmul.f32 %v381, %v408
      %v413 = vmul.f32 %v385, %v404
      %v414 = vmul.f32 %v385, %v408
      %v415 = vmul.f32 %v389, %v404
      %v416 = vmul.f32 %v389, %v408
      %v417 = vadd.f32 %v367, %v409
      %v418 = vadd.f32 %v368, %v410
      %v419 = vadd.f32 %v369, %v411
      %v420 = vadd.f32 %v370, %v412
      %v421 = vadd.f32 %v371, %v413
      %v422 = vadd.f32 %v372, %v414
      %v423 = vadd.f32 %v373, %v415
      %v424 = vadd.f32 %v374, %v416
      %425 = vset.pattern.permute.xlu0 2
      %426 = vperm.xlu0 %425, %v320
      %v427 = vpop.permute.xlu0 %426
      %429 = vset.pattern.permute.xlu0 2
      %430 = vperm.xlu0 %429, %v321
      %v431 = vpop.permute.xlu0 %430
      %433 = vset.pattern.permute.xlu0 2
      %434 = vperm.xlu0 %433, %v322
      %v435 = vpop.permute.xlu0 %434
      %437 = vset.pattern.permute.xlu0 2
      %438 = vperm.xlu0 %437, %v323
      %v439 = vpop.permute.xlu0 %438
      %v441 = vlaneseq
      %v442 = vshrl.u32 %v441, 7
      %v443 = vsub.s32 2, %v442
      %v444 = vrot.slane %v319, %v443
      %v445 = vlaneseq
      %v446 = vshrl.u32 %v445, 7
      %v447 = vsub.s32 6, %v446
      %v448 = vrot.slane %v319, %v447
      %v451 = vlaneseq
      %v452 = vshrl.u32 %v451, 7
      %v453 = vsub.s32 2, %v452
      %v454 = vrot.slane %v444, %v453
      %v455 = vlaneseq
      %v456 = vshrl.u32 %v455, 7
      %v457 = vsub.s32 2, %v456
      %v458 = vrot.slane %v448, %v457
      %v459 = vmul.f32 %v427, %v454
      %v460 = vmul.f32 %v427, %v458
      %v461 = vmul.f32 %v431, %v454
      %v462 = vmul.f32 %v431, %v458
      %v463 = vmul.f32 %v435, %v454
      %v464 = vmul.f32 %v435, %v458
      %v465 = vmul.f32 %v439, %v454
      %v466 = vmul.f32 %v439, %v458
      %v467 = vadd.f32 %v417, %v459
      %v468 = vadd.f32 %v418, %v460
      %v469 = vadd.f32 %v419, %v461
      %v470 = vadd.f32 %v420, %v462
      %v471 = vadd.f32 %v421, %v463
      %v472 = vadd.f32 %v422, %v464
      %v473 = vadd.f32 %v423, %v465
      %v474 = vadd.f32 %v424, %v466
      %475 = vset.pattern.permute.xlu0 3
      %476 = vperm.xlu0 %475, %v320
      %v477 = vpop.permute.xlu0 %476
      %479 = vset.pattern.permute.xlu0 3
      %480 = vperm.xlu0 %479, %v321
      %v481 = vpop.permute.xlu0 %480
      %483 = vset.pattern.permute.xlu0 3
      %484 = vperm.xlu0 %483, %v322
      %v485 = vpop.permute.xlu0 %484
      %487 = vset.pattern.permute.xlu0 3
      %488 = vperm.xlu0 %487, %v323
      %v489 = vpop.permute.xlu0 %488
      %v491 = vlaneseq
      %v492 = vshrl.u32 %v491, 7
      %v493 = vsub.s32 3, %v492
      %v494 = vrot.slane %v319, %v493
      %v495 = vlaneseq
      %v496 = vshrl.u32 %v495, 7
      %v497 = vsub.s32 7, %v496
      %v498 = vrot.slane %v319, %v497
      %v501 = vlaneseq
      %v502 = vshrl.u32 %v501, 7
      %v503 = vsub.s32 3, %v502
      %v504 = vrot.slane %v494, %v503
      %v505 = vlaneseq
      %v506 = vshrl.u32 %v505, 7
      %v507 = vsub.s32 3, %v506
      %v508 = vrot.slane %v498, %v507
      %v509 = vmul.f32 %v477, %v504
      %v510 = vmul.f32 %v477, %v508
      %v511 = vmul.f32 %v481, %v504
      %v512 = vmul.f32 %v481, %v508
      %v513 = vmul.f32 %v485, %v504
      %v514 = vmul.f32 %v485, %v508
      %v515 = vmul.f32 %v489, %v504
      %v516 = vmul.f32 %v489, %v508
      %v517 = vadd.f32 %v467, %v509
      %v518 = vadd.f32 %v468, %v510
      %v519 = vadd.f32 %v469, %v511
      %v520 = vadd.f32 %v470, %v512
      %v521 = vadd.f32 %v471, %v513
      %v522 = vadd.f32 %v472, %v514
      %v523 = vadd.f32 %v473, %v515
      %v524 = vadd.f32 %v474, %v516
      %526 = vset.pattern.permute.xlu0 0
      %527 = vperm.xlu0 %526, %v324
      %v528 = vpop.permute.xlu0 %527
      %531 = vset.pattern.permute.xlu0 0
      %532 = vperm.xlu0 %531, %v325
      %v533 = vpop.permute.xlu0 %532
      %536 = vset.pattern.permute.xlu0 0
      %537 = vperm.xlu0 %536, %v326
      %v538 = vpop.permute.xlu0 %537
      %541 = vset.pattern.permute.xlu0 0
      %542 = vperm.xlu0 %541, %v327
      %v543 = vpop.permute.xlu0 %542
      %v545 = vadd.f32 %v517, %v528
      %v546 = vadd.f32 %v518, %v528
      %v547 = vadd.f32 %v519, %v533
      %v548 = vadd.f32 %v520, %v533
      %v549 = vadd.f32 %v521, %v538
      %v550 = vadd.f32 %v522, %v538
      %v551 = vadd.f32 %v523, %v543
      %v552 = vadd.f32 %v524, %v543
      %v553 = vmul.f32 %v545, 30.0
      %v554 = vmul.f32 %v546, 30.0
      %v555 = vmul.f32 %v547, 30.0
      %v556 = vmul.f32 %v548, 30.0
      %v557 = vmul.f32 %v549, 30.0
      %v558 = vmul.f32 %v550, 30.0
      %v559 = vmul.f32 %v551, 30.0
      %v560 = vmul.f32 %v552, 30.0
      %v561 = vand.u32 2147483647, %v553
      %vm562 = vcmp.le.f32.partialorder %v561, 0.7853982
      %vm563 = vcmp.lt.s32.totalorder %v553, 0
      %v564 = vand.u32 %v553, 2139095040
      %v565 = vshrl.u32 %v564, 23
      %v566 = vsub.s32 %v565, 127
      %v567 = vand.u32 2147483647, %v553
      %v568 = vand.u32 %v567, 8388607
      %v569 = vor.u32 %v568, 8388608
      %v570 = vsub.s32 0, %v569
      %v571 = vadd.s32 %v566, 1
      %vm572 = vcmp.gt.s32.totalorder %v571, 0
      %v573 = vsel %vm572, %v571, 0
      %v574 = vshrl.u32 %v573, 5
      %v575 = vand.u32 %v573, 31
      %v576 = vsub.s32 32, %v575
      %v577 = vshrl.u32 683565275, %v576
      %v578 = vshll.u32 683565275, %v575
      %v579 = vshrl.u32 2475754826, %v576
      %v580 = vor.u32 %v578, %v579
      %v581 = vshll.u32 2475754826, %v575
      %v582 = vshrl.u32 2131351028, %v576
      %v583 = vor.u32 %v581, %v582
      %v584 = vshll.u32 2131351028, %v575
      %v585 = vshrl.u32 2102212464, %v576
      %v586 = vor.u32 %v584, %v585
      %v587 = vshll.u32 2102212464, %v575
      %v588 = vshrl.u32 920167782, %v576
      %v589 = vor.u32 %v587, %v588
      %v590 = vshll.u32 920167782, %v575
      %v591 = vshrl.u32 1326507024, %v576
      %v592 = vor.u32 %v590, %v591
      %vm593 = vcmp.lt.s32.totalorder %v574, 1
      %vm594 = vcmp.lt.s32.totalorder %v574, 2
      %vm595 = vcmp.lt.s32.totalorder %v574, 3
      %vm596 = vcmp.lt.s32.totalorder %v574, 4
      %v597 = vsel %vm593, %v577, %v580
      %v598 = vsel %vm596, %v586, 2102212464
      %v599 = vsel %vm595, %v583, %v598
      %v600 = vsel %vm594, %v597, %v599
      %v601 = vsel %vm593, %v580, %v583
      %v602 = vsel %vm596, %v589, 920167782
      %v603 = vsel %vm595, %v586, %v602
      %v604 = vsel %vm594, %v601, %v603
      %v605 = vsel %vm593, %v583, %v586
      %v606 = vsel %vm596, %v592, 1326507024
      %v607 = vsel %vm595, %v589, %v606
      %v608 = vsel %vm594, %v605, %v607
      %v609 = vshll.u32 %v569, 8
      %v610 = vmul.u32.u64.compose %v609, %v608
      %v611 = vextract.low.u32 %v610
      %v612 = vextract.high.u32 %v610
      %v613 = vmul.u32.u64.compose %v609, %v604
      %v614 = vextract.low.u32 %v613
      %v615 = vextract.high.u32 %v613
      %v616 = vmul.u32 %v609, %v600
      %v617 = vadd.s32 %v612, %v614
      %vm618 = vc.u32 %v612, %v614
      %v619 = vadd.s32 %v615, 1
      %v620 = vsel %vm618, %v619, %v615
      %v621 = vadd.s32 %v616, %v620
      %v622 = vadd.s32 %v621, 536870912
      %v623 = vshrl.u32 %v622, 30
      %v624 = vshll.u32 %v623, 30
      %v625 = vsub.s32 %v621, %v624
      %vm626 = vcmp.lt.s32.totalorder %v625, 0
      %v627 = vsub.s32 0, %v625
      %v628 = vsel %vm626, %v627, %v625
      %v629 = vclz %v628
      %v630 = vsub.s32 %v629, 2
      %vm631 = vcmp.gt.s32.totalorder 0, %v630
      %v632 = vsel %vm631, 0, %v630
      %v633 = vsub.s32 32, %v632
      %v634 = vshll.u32 %v625, %v632
      %v635 = vshrl.u32 %v617, %v633
      %v636 = vor.u32 %v634, %v635
      %v637 = vsub.s32 4294967266, %v632
      %v638 = vadd.s32 %v637, 127
      %v639 = vshll.u32 %v638, 23
      %v640 = vor.u32 4788187, %v639
      %v641 = vand.u32 2147483647, %v640
      %v643 = vcvt.s32.f32 %v636
      %v644 = vmul.f32 %v643, %v641
      %v645 = vxor.u32 %v644, 2147483648
      %v646 = vsel %vm563, %v645, %v644
      %v647 = vsub.s32 4, %v623
      %v648 = vsel %vm563, %v647, %v623
      %v649 = vsel %vm562, %v553, %v646
      %v650 = vsel %vm562, 0, %v648
      %v651 = vcosq.f32.pop %v649
      %v652 = vsinq.f32.pop %v649
      %vm653 = vweird.f32 %v553
      %v654 = vadd.s32 %v650, 3
      %v655 = vand.u32 %v654, 3
      %vm656 = vcmp.lt.s32.totalorder %v655, 2
      %vm657 = vcmp.eq.s32.totalorder %v655, 0
      %v658 = vxor.u32 %v652, 2147483648
      %v659 = vsel %vm657, %v651, %v658
      %vm660 = vcmp.eq.s32.totalorder %v655, 2
      %v661 = vxor.u32 %v651, 2147483648
      %v662 = vsel %vm660, %v661, %v652
      %v663 = vsel %vm656, %v659, %v662
      %v664 = vsel %vm653, nan, %v663
      %v665 = vand.u32 2147483647, %v554
      %vm666 = vcmp.le.f32.partialorder %v665, 0.7853982
      %vm667 = vcmp.lt.s32.totalorder %v554, 0
      %v668 = vand.u32 %v554, 2139095040
      %v669 = vshrl.u32 %v668, 23
      %v670 = vsub.s32 %v669, 127
      %v671 = vand.u32 2147483647, %v554
      %v672 = vand.u32 %v671, 8388607
      %v673 = vor.u32 %v672, 8388608
      %v674 = vsub.s32 0, %v673
      %v675 = vadd.s32 %v670, 1
      %vm676 = vcmp.gt.s32.totalorder %v675, 0
      %v677 = vsel %vm676, %v675, 0
      %v678 = vshrl.u32 %v677, 5
      %v679 = vand.u32 %v677, 31
      %v680 = vsub.s32 32, %v679
      %v681 = vshrl.u32 683565275, %v680
      %v682 = vshll.u32 683565275, %v679
      %v683 = vshrl.u32 2475754826, %v680
      %v684 = vor.u32 %v682, %v683
      %v685 = vshll.u32 2475754826, %v679
      %v686 = vshrl.u32 2131351028, %v680
      %v687 = vor.u32 %v685, %v686
      %v688 = vshll.u32 2131351028, %v679
      %v689 = vshrl.u32 2102212464, %v680
      %v690 = vor.u32 %v688, %v689
      %v691 = vshll.u32 2102212464, %v679
      %v692 = vshrl.u32 920167782, %v680
      %v693 = vor.u32 %v691, %v692
      %v694 = vshll.u32 920167782, %v679
      %v695 = vshrl.u32 1326507024, %v680
      %v696 = vor.u32 %v694, %v695
      %vm697 = vcmp.lt.s32.totalorder %v678, 1
      %vm698 = vcmp.lt.s32.totalorder %v678, 2
      %vm699 = vcmp.lt.s32.totalorder %v678, 3
      %vm700 = vcmp.lt.s32.totalorder %v678, 4
      %v701 = vsel %vm697, %v681, %v684
      %v702 = vsel %vm700, %v690, 2102212464
      %v703 = vsel %vm699, %v687, %v702
      %v704 = vsel %vm698, %v701, %v703
      %v705 = vsel %vm697, %v684, %v687
      %v706 = vsel %vm700, %v693, 920167782
      %v707 = vsel %vm699, %v690, %v706
      %v708 = vsel %vm698, %v705, %v707
      %v709 = vsel %vm697, %v687, %v690
      %v710 = vsel %vm700, %v696, 1326507024
      %v711 = vsel %vm699, %v693, %v710
      %v712 = vsel %vm698, %v709, %v711
      %v713 = vshll.u32 %v673, 8
      %v714 = vmul.u32.u64.compose %v713, %v712
      %v715 = vextract.low.u32 %v714
      %v716 = vextract.high.u32 %v714
      %v717 = vmul.u32.u64.compose %v713, %v708
      %v718 = vextract.low.u32 %v717
      %v719 = vextract.high.u32 %v717
      %v720 = vmul.u32 %v713, %v704
      %v721 = vadd.s32 %v716, %v718
      %vm722 = vc.u32 %v716, %v718
      %v723 = vadd.s32 %v719, 1
      %v724 = vsel %vm722, %v723, %v719
      %v725 = vadd.s32 %v720, %v724
      %v726 = vadd.s32 %v725, 536870912
      %v727 = vshrl.u32 %v726, 30
      %v728 = vshll.u32 %v727, 30
      %v729 = vsub.s32 %v725, %v728
      %vm730 = vcmp.lt.s32.totalorder %v729, 0
      %v731 = vsub.s32 0, %v729
      %v732 = vsel %vm730, %v731, %v729
      %v733 = vclz %v732
      %v734 = vsub.s32 %v733, 2
      %vm735 = vcmp.gt.s32.totalorder 0, %v734
      %v736 = vsel %vm735, 0, %v734
      %v737 = vsub.s32 32, %v736
      %v738 = vshll.u32 %v729, %v736
      %v739 = vshrl.u32 %v721, %v737
      %v740 = vor.u32 %v738, %v739
      %v741 = vsub.s32 4294967266, %v736
      %v742 = vadd.s32 %v741, 127
      %v743 = vshll.u32 %v742, 23
      %v744 = vor.u32 4788187, %v743
      %v745 = vand.u32 2147483647, %v744
      %v747 = vcvt.s32.f32 %v740
      %v748 = vmul.f32 %v747, %v745
      %v749 = vxor.u32 %v748, 2147483648
      %v750 = vsel %vm667, %v749, %v748
      %v751 = vsub.s32 4, %v727
      %v752 = vsel %vm667, %v751, %v727
      %v753 = vsel %vm666, %v554, %v750
      %v754 = vsel %vm666, 0, %v752
      %v755 = vcosq.f32.pop %v753
      %v756 = vsinq.f32.pop %v753
      %vm757 = vweird.f32 %v554
      %v758 = vadd.s32 %v754, 3
      %v759 = vand.u32 %v758, 3
      %vm760 = vcmp.lt.s32.totalorder %v759, 2
      %vm761 = vcmp.eq.s32.totalorder %v759, 0
      %v762 = vxor.u32 %v756, 2147483648
      %v763 = vsel %vm761, %v755, %v762
      %vm764 = vcmp.eq.s32.totalorder %v759, 2
      %v765 = vxor.u32 %v755, 2147483648
      %v766 = vsel %vm764, %v765, %v756
      %v767 = vsel %vm760, %v763, %v766
      %v768 = vsel %vm757, nan, %v767
      %v769 = vand.u32 2147483647, %v555
      %vm770 = vcmp.le.f32.partialorder %v769, 0.7853982
      %vm771 = vcmp.lt.s32.totalorder %v555, 0
      %v772 = vand.u32 %v555, 2139095040
      %v773 = vshrl.u32 %v772, 23
      %v774 = vsub.s32 %v773, 127
      %v775 = vand.u32 2147483647, %v555
      %v776 = vand.u32 %v775, 8388607
      %v777 = vor.u32 %v776, 8388608
      %v778 = vsub.s32 0, %v777
      %v779 = vadd.s32 %v774, 1
      %vm780 = vcmp.gt.s32.totalorder %v779, 0
      %v781 = vsel %vm780, %v779, 0
      %v782 = vshrl.u32 %v781, 5
      %v783 = vand.u32 %v781, 31
      %v784 = vsub.s32 32, %v783
      %v785 = vshrl.u32 683565275, %v784
      %v786 = vshll.u32 683565275, %v783
      %v787 = vshrl.u32 2475754826, %v784
      %v788 = vor.u32 %v786, %v787
      %v789 = vshll.u32 2475754826, %v783
      %v790 = vshrl.u32 2131351028, %v784
      %v791 = vor.u32 %v789, %v790
      %v792 = vshll.u32 2131351028, %v783
      %v793 = vshrl.u32 2102212464, %v784
      %v794 = vor.u32 %v792, %v793
      %v795 = vshll.u32 2102212464, %v783
      %v796 = vshrl.u32 920167782, %v784
      %v797 = vor.u32 %v795, %v796
      %v798 = vshll.u32 920167782, %v783
      %v799 = vshrl.u32 1326507024, %v784
      %v800 = vor.u32 %v798, %v799
      %vm801 = vcmp.lt.s32.totalorder %v782, 1
      %vm802 = vcmp.lt.s32.totalorder %v782, 2
      %vm803 = vcmp.lt.s32.totalorder %v782, 3
      %vm804 = vcmp.lt.s32.totalorder %v782, 4
      %v805 = vsel %vm801, %v785, %v788
      %v806 = vsel %vm804, %v794, 2102212464
      %v807 = vsel %vm803, %v791, %v806
      %v808 = vsel %vm802, %v805, %v807
      %v809 = vsel %vm801, %v788, %v791
      %v810 = vsel %vm804, %v797, 920167782
      %v811 = vsel %vm803, %v794, %v810
      %v812 = vsel %vm802, %v809, %v811
      %v813 = vsel %vm801, %v791, %v794
      %v814 = vsel %vm804, %v800, 1326507024
      %v815 = vsel %vm803, %v797, %v814
      %v816 = vsel %vm802, %v813, %v815
      %v817 = vshll.u32 %v777, 8
      %v818 = vmul.u32.u64.compose %v817, %v816
      %v819 = vextract.low.u32 %v818
      %v820 = vextract.high.u32 %v818
      %v821 = vmul.u32.u64.compose %v817, %v812
      %v822 = vextract.low.u32 %v821
      %v823 = vextract.high.u32 %v821
      %v824 = vmul.u32 %v817, %v808
      %v825 = vadd.s32 %v820, %v822
      %vm826 = vc.u32 %v820, %v822
      %v827 = vadd.s32 %v823, 1
      %v828 = vsel %vm826, %v827, %v823
      %v829 = vadd.s32 %v824, %v828
      %v830 = vadd.s32 %v829, 536870912
      %v831 = vshrl.u32 %v830, 30
      %v832 = vshll.u32 %v831, 30
      %v833 = vsub.s32 %v829, %v832
      %vm834 = vcmp.lt.s32.totalorder %v833, 0
      %v835 = vsub.s32 0, %v833
      %v836 = vsel %vm834, %v835, %v833
      %v837 = vclz %v836
      %v838 = vsub.s32 %v837, 2
      %vm839 = vcmp.gt.s32.totalorder 0, %v838
      %v840 = vsel %vm839, 0, %v838
      %v841 = vsub.s32 32, %v840
      %v842 = vshll.u32 %v833, %v840
      %v843 = vshrl.u32 %v825, %v841
      %v844 = vor.u32 %v842, %v843
      %v845 = vsub.s32 4294967266, %v840
      %v846 = vadd.s32 %v845, 127
      %v847 = vshll.u32 %v846, 23
      %v848 = vor.u32 4788187, %v847
      %v849 = vand.u32 2147483647, %v848
      %v851 = vcvt.s32.f32 %v844
      %v852 = vmul.f32 %v851, %v849
      %v853 = vxor.u32 %v852, 2147483648
      %v854 = vsel %vm771, %v853, %v852
      %v855 = vsub.s32 4, %v831
      %v856 = vsel %vm771, %v855, %v831
      %v857 = vsel %vm770, %v555, %v854
      %v858 = vsel %vm770, 0, %v856
      %v859 = vcosq.f32.pop %v857
      %v860 = vsinq.f32.pop %v857
      %vm861 = vweird.f32 %v555
      %v862 = vadd.s32 %v858, 3
      %v863 = vand.u32 %v862, 3
      %vm864 = vcmp.lt.s32.totalorder %v863, 2
      %vm865 = vcmp.eq.s32.totalorder %v863, 0
      %v866 = vxor.u32 %v860, 2147483648
      %v867 = vsel %vm865, %v859, %v866
      %vm868 = vcmp.eq.s32.totalorder %v863, 2
      %v869 = vxor.u32 %v859, 2147483648
      %v870 = vsel %vm868, %v869, %v860
      %v871 = vsel %vm864, %v867, %v870
      %v872 = vsel %vm861, nan, %v871
      %v873 = vand.u32 2147483647, %v556
      %vm874 = vcmp.le.f32.partialorder %v873, 0.7853982
      %vm875 = vcmp.lt.s32.totalorder %v556, 0
      %v876 = vand.u32 %v556, 2139095040
      %v877 = vshrl.u32 %v876, 23
      %v878 = vsub.s32 %v877, 127
      %v879 = vand.u32 2147483647, %v556
      %v880 = vand.u32 %v879, 8388607
      %v881 = vor.u32 %v880, 8388608
      %v882 = vsub.s32 0, %v881
      %v883 = vadd.s32 %v878, 1
      %vm884 = vcmp.gt.s32.totalorder %v883, 0
      %v885 = vsel %vm884, %v883, 0
      %v886 = vshrl.u32 %v885, 5
      %v887 = vand.u32 %v885, 31
      %v888 = vsub.s32 32, %v887
      %v889 = vshrl.u32 683565275, %v888
      %v890 = vshll.u32 683565275, %v887
      %v891 = vshrl.u32 2475754826, %v888
      %v892 = vor.u32 %v890, %v891
      %v893 = vshll.u32 2475754826, %v887
      %v894 = vshrl.u32 2131351028, %v888
      %v895 = vor.u32 %v893, %v894
      %v896 = vshll.u32 2131351028, %v887
      %v897 = vshrl.u32 2102212464, %v888
      %v898 = vor.u32 %v896, %v897
      %v899 = vshll.u32 2102212464, %v887
      %v900 = vshrl.u32 920167782, %v888
      %v901 = vor.u32 %v899, %v900
      %v902 = vshll.u32 920167782, %v887
      %v903 = vshrl.u32 1326507024, %v888
      %v904 = vor.u32 %v902, %v903
      %vm905 = vcmp.lt.s32.totalorder %v886, 1
      %vm906 = vcmp.lt.s32.totalorder %v886, 2
      %vm907 = vcmp.lt.s32.totalorder %v886, 3
      %vm908 = vcmp.lt.s32.totalorder %v886, 4
      %v909 = vsel %vm905, %v889, %v892
      %v910 = vsel %vm908, %v898, 2102212464
      %v911 = vsel %vm907, %v895, %v910
      %v912 = vsel %vm906, %v909, %v911
      %v913 = vsel %vm905, %v892, %v895
      %v914 = vsel %vm908, %v901, 920167782
      %v915 = vsel %vm907, %v898, %v914
      %v916 = vsel %vm906, %v913, %v915
      %v917 = vsel %vm905, %v895, %v898
      %v918 = vsel %vm908, %v904, 1326507024
      %v919 = vsel %vm907, %v901, %v918
      %v920 = vsel %vm906, %v917, %v919
      %v921 = vshll.u32 %v881, 8
      %v922 = vmul.u32.u64.compose %v921, %v920
      %v923 = vextract.low.u32 %v922
      %v924 = vextract.high.u32 %v922
      %v925 = vmul.u32.u64.compose %v921, %v916
      %v926 = vextract.low.u32 %v925
      %v927 = vextract.high.u32 %v925
      %v928 = vmul.u32 %v921, %v912
      %v929 = vadd.s32 %v924, %v926
      %vm930 = vc.u32 %v924, %v926
      %v931 = vadd.s32 %v927, 1
      %v932 = vsel %vm930, %v931, %v927
      %v933 = vadd.s32 %v928, %v932
      %v934 = vadd.s32 %v933, 536870912
      %v935 = vshrl.u32 %v934, 30
      %v936 = vshll.u32 %v935, 30
      %v937 = vsub.s32 %v933, %v936
      %vm938 = vcmp.lt.s32.totalorder %v937, 0
      %v939 = vsub.s32 0, %v937
      %v940 = vsel %vm938, %v939, %v937
      %v941 = vclz %v940
      %v942 = vsub.s32 %v941, 2
      %vm943 = vcmp.gt.s32.totalorder 0, %v942
      %v944 = vsel %vm943, 0, %v942
      %v945 = vsub.s32 32, %v944
      %v946 = vshll.u32 %v937, %v944
      %v947 = vshrl.u32 %v929, %v945
      %v948 = vor.u32 %v946, %v947
      %v949 = vsub.s32 4294967266, %v944
      %v950 = vadd.s32 %v949, 127
      %v951 = vshll.u32 %v950, 23
      %v952 = vor.u32 4788187, %v951
      %v953 = vand.u32 2147483647, %v952
      %v955 = vcvt.s32.f32 %v948
      %v956 = vmul.f32 %v955, %v953
      %v957 = vxor.u32 %v956, 2147483648
      %v958 = vsel %vm875, %v957, %v956
      %v959 = vsub.s32 4, %v935
      %v960 = vsel %vm875, %v959, %v935
      %v961 = vsel %vm874, %v556, %v958
      %v962 = vsel %vm874, 0, %v960
      %v963 = vcosq.f32.pop %v961
      %v964 = vsinq.f32.pop %v961
      %vm965 = vweird.f32 %v556
      %v966 = vadd.s32 %v962, 3
      %v967 = vand.u32 %v966, 3
      %vm968 = vcmp.lt.s32.totalorder %v967, 2
      %vm969 = vcmp.eq.s32.totalorder %v967, 0
      %v970 = vxor.u32 %v964, 2147483648
      %v971 = vsel %vm969, %v963, %v970
      %vm972 = vcmp.eq.s32.totalorder %v967, 2
      %v973 = vxor.u32 %v963, 2147483648
      %v974 = vsel %vm972, %v973, %v964
      %v975 = vsel %vm968, %v971, %v974
      %v976 = vsel %vm965, nan, %v975
      %v977 = vand.u32 2147483647, %v557
      %vm978 = vcmp.le.f32.partialorder %v977, 0.7853982
      %vm979 = vcmp.lt.s32.totalorder %v557, 0
      %v980 = vand.u32 %v557, 2139095040
      %v981 = vshrl.u32 %v980, 23
      %v982 = vsub.s32 %v981, 127
      %v983 = vand.u32 2147483647, %v557
      %v984 = vand.u32 %v983, 8388607
      %v985 = vor.u32 %v984, 8388608
      %v986 = vsub.s32 0, %v985
      %v987 = vadd.s32 %v982, 1
      %vm988 = vcmp.gt.s32.totalorder %v987, 0
      %v989 = vsel %vm988, %v987, 0
      %v990 = vshrl.u32 %v989, 5
      %v991 = vand.u32 %v989, 31
      %v992 = vsub.s32 32, %v991
      %v993 = vshrl.u32 683565275, %v992
      %v994 = vshll.u32 683565275, %v991
      %v995 = vshrl.u32 2475754826, %v992
      %v996 = vor.u32 %v994, %v995
      %v997 = vshll.u32 2475754826, %v991
      %v998 = vshrl.u32 2131351028, %v992
      %v999 = vor.u32 %v997, %v998
      %v1000 = vshll.u32 2131351028, %v991
      %v1001 = vshrl.u32 2102212464, %v992
      %v1002 = vor.u32 %v1000, %v1001
      %v1003 = vshll.u32 2102212464, %v991
      %v1004 = vshrl.u32 920167782, %v992
      %v1005 = vor.u32 %v1003, %v1004
      %v1006 = vshll.u32 920167782, %v991
      %v1007 = vshrl.u32 1326507024, %v992
      %v1008 = vor.u32 %v1006, %v1007
      %vm1009 = vcmp.lt.s32.totalorder %v990, 1
      %vm1010 = vcmp.lt.s32.totalorder %v990, 2
      %vm1011 = vcmp.lt.s32.totalorder %v990, 3
      %vm1012 = vcmp.lt.s32.totalorder %v990, 4
      %v1013 = vsel %vm1009, %v993, %v996
      %v1014 = vsel %vm1012, %v1002, 2102212464
      %v1015 = vsel %vm1011, %v999, %v1014
      %v1016 = vsel %vm1010, %v1013, %v1015
      %v1017 = vsel %vm1009, %v996, %v999
      %v1018 = vsel %vm1012, %v1005, 920167782
      %v1019 = vsel %vm1011, %v1002, %v1018
      %v1020 = vsel %vm1010, %v1017, %v1019
      %v1021 = vsel %vm1009, %v999, %v1002
      %v1022 = vsel %vm1012, %v1008, 1326507024
      %v1023 = vsel %vm1011, %v1005, %v1022
      %v1024 = vsel %vm1010, %v1021, %v1023
      %v1025 = vshll.u32 %v985, 8
      %v1026 = vmul.u32.u64.compose %v1025, %v1024
      %v1027 = vextract.low.u32 %v1026
      %v1028 = vextract.high.u32 %v1026
      %v1029 = vmul.u32.u64.compose %v1025, %v1020
      %v1030 = vextract.low.u32 %v1029
      %v1031 = vextract.high.u32 %v1029
      %v1032 = vmul.u32 %v1025, %v1016
      %v1033 = vadd.s32 %v1028, %v1030
      %vm1034 = vc.u32 %v1028, %v1030
      %v1035 = vadd.s32 %v1031, 1
      %v1036 = vsel %vm1034, %v1035, %v1031
      %v1037 = vadd.s32 %v1032, %v1036
      %v1038 = vadd.s32 %v1037, 536870912
      %v1039 = vshrl.u32 %v1038, 30
      %v1040 = vshll.u32 %v1039, 30
      %v1041 = vsub.s32 %v1037, %v1040
      %vm1042 = vcmp.lt.s32.totalorder %v1041, 0
      %v1043 = vsub.s32 0, %v1041
      %v1044 = vsel %vm1042, %v1043, %v1041
      %v1045 = vclz %v1044
      %v1046 = vsub.s32 %v1045, 2
      %vm1047 = vcmp.gt.s32.totalorder 0, %v1046
      %v1048 = vsel %vm1047, 0, %v1046
      %v1049 = vsub.s32 32, %v1048
      %v1050 = vshll.u32 %v1041, %v1048
      %v1051 = vshrl.u32 %v1033, %v1049
      %v1052 = vor.u32 %v1050, %v1051
      %v1053 = vsub.s32 4294967266, %v1048
      %v1054 = vadd.s32 %v1053, 127
      %v1055 = vshll.u32 %v1054, 23
      %v1056 = vor.u32 4788187, %v1055
      %v1057 = vand.u32 2147483647, %v1056
      %v1059 = vcvt.s32.f32 %v1052
      %v1060 = vmul.f32 %v1059, %v1057
      %v1061 = vxor.u32 %v1060, 2147483648
      %v1062 = vsel %vm979, %v1061, %v1060
      %v1063 = vsub.s32 4, %v1039
      %v1064 = vsel %vm979, %v1063, %v1039
      %v1065 = vsel %vm978, %v557, %v1062
      %v1066 = vsel %vm978, 0, %v1064
      %v1067 = vcosq.f32.pop %v1065
      %v1068 = vsinq.f32.pop %v1065
      %vm1069 = vweird.f32 %v557
      %v1070 = vadd.s32 %v1066, 3
      %v1071 = vand.u32 %v1070, 3
      %vm1072 = vcmp.lt.s32.totalorder %v1071, 2
      %vm1073 = vcmp.eq.s32.totalorder %v1071, 0
      %v1074 = vxor.u32 %v1068, 2147483648
      %v1075 = vsel %vm1073, %v1067, %v1074
      %vm1076 = vcmp.eq.s32.totalorder %v1071, 2
      %v1077 = vxor.u32 %v1067, 2147483648
      %v1078 = vsel %vm1076, %v1077, %v1068
      %v1079 = vsel %vm1072, %v1075, %v1078
      %v1080 = vsel %vm1069, nan, %v1079
      %v1081 = vand.u32 2147483647, %v558
      %vm1082 = vcmp.le.f32.partialorder %v1081, 0.7853982
      %vm1083 = vcmp.lt.s32.totalorder %v558, 0
      %v1084 = vand.u32 %v558, 2139095040
      %v1085 = vshrl.u32 %v1084, 23
      %v1086 = vsub.s32 %v1085, 127
      %v1087 = vand.u32 2147483647, %v558
      %v1088 = vand.u32 %v1087, 8388607
      %v1089 = vor.u32 %v1088, 8388608
      %v1090 = vsub.s32 0, %v1089
      %v1091 = vadd.s32 %v1086, 1
      %vm1092 = vcmp.gt.s32.totalorder %v1091, 0
      %v1093 = vsel %vm1092, %v1091, 0
      %v1094 = vshrl.u32 %v1093, 5
      %v1095 = vand.u32 %v1093, 31
      %v1096 = vsub.s32 32, %v1095
      %v1097 = vshrl.u32 683565275, %v1096
      %v1098 = vshll.u32 683565275, %v1095
      %v1099 = vshrl.u32 2475754826, %v1096
      %v1100 = vor.u32 %v1098, %v1099
      %v1101 = vshll.u32 2475754826, %v1095
      %v1102 = vshrl.u32 2131351028, %v1096
      %v1103 = vor.u32 %v1101, %v1102
      %v1104 = vshll.u32 2131351028, %v1095
      %v1105 = vshrl.u32 2102212464, %v1096
      %v1106 = vor.u32 %v1104, %v1105
      %v1107 = vshll.u32 2102212464, %v1095
      %v1108 = vshrl.u32 920167782, %v1096
      %v1109 = vor.u32 %v1107, %v1108
      %v1110 = vshll.u32 920167782, %v1095
      %v1111 = vshrl.u32 1326507024, %v1096
      %v1112 = vor.u32 %v1110, %v1111
      %vm1113 = vcmp.lt.s32.totalorder %v1094, 1
      %vm1114 = vcmp.lt.s32.totalorder %v1094, 2
      %vm1115 = vcmp.lt.s32.totalorder %v1094, 3
      %vm1116 = vcmp.lt.s32.totalorder %v1094, 4
      %v1117 = vsel %vm1113, %v1097, %v1100
      %v1118 = vsel %vm1116, %v1106, 2102212464
      %v1119 = vsel %vm1115, %v1103, %v1118
      %v1120 = vsel %vm1114, %v1117, %v1119
      %v1121 = vsel %vm1113, %v1100, %v1103
      %v1122 = vsel %vm1116, %v1109, 920167782
      %v1123 = vsel %vm1115, %v1106, %v1122
      %v1124 = vsel %vm1114, %v1121, %v1123
      %v1125 = vsel %vm1113, %v1103, %v1106
      %v1126 = vsel %vm1116, %v1112, 1326507024
      %v1127 = vsel %vm1115, %v1109, %v1126
      %v1128 = vsel %vm1114, %v1125, %v1127
      %v1129 = vshll.u32 %v1089, 8
      %v1130 = vmul.u32.u64.compose %v1129, %v1128
      %v1131 = vextract.low.u32 %v1130
      %v1132 = vextract.high.u32 %v1130
      %v1133 = vmul.u32.u64.compose %v1129, %v1124
      %v1134 = vextract.low.u32 %v1133
      %v1135 = vextract.high.u32 %v1133
      %v1136 = vmul.u32 %v1129, %v1120
      %v1137 = vadd.s32 %v1132, %v1134
      %vm1138 = vc.u32 %v1132, %v1134
      %v1139 = vadd.s32 %v1135, 1
      %v1140 = vsel %vm1138, %v1139, %v1135
      %v1141 = vadd.s32 %v1136, %v1140
      %v1142 = vadd.s32 %v1141, 536870912
      %v1143 = vshrl.u32 %v1142, 30
      %v1144 = vshll.u32 %v1143, 30
      %v1145 = vsub.s32 %v1141, %v1144
      %vm1146 = vcmp.lt.s32.totalorder %v1145, 0
      %v1147 = vsub.s32 0, %v1145
      %v1148 = vsel %vm1146, %v1147, %v1145
      %v1149 = vclz %v1148
      %v1150 = vsub.s32 %v1149, 2
      %vm1151 = vcmp.gt.s32.totalorder 0, %v1150
      %v1152 = vsel %vm1151, 0, %v1150
      %v1153 = vsub.s32 32, %v1152
      %v1154 = vshll.u32 %v1145, %v1152
      %v1155 = vshrl.u32 %v1137, %v1153
      %v1156 = vor.u32 %v1154, %v1155
      %v1157 = vsub.s32 4294967266, %v1152
      %v1158 = vadd.s32 %v1157, 127
      %v1159 = vshll.u32 %v1158, 23
      %v1160 = vor.u32 4788187, %v1159
      %v1161 = vand.u32 2147483647, %v1160
      %v1163 = vcvt.s32.f32 %v1156
      %v1164 = vmul.f32 %v1163, %v1161
      %v1165 = vxor.u32 %v1164, 2147483648
      %v1166 = vsel %vm1083, %v1165, %v1164
      %v1167 = vsub.s32 4, %v1143
      %v1168 = vsel %vm1083, %v1167, %v1143
      %v1169 = vsel %vm1082, %v558, %v1166
      %v1170 = vsel %vm1082, 0, %v1168
      %v1171 = vcosq.f32.pop %v1169
      %v1172 = vsinq.f32.pop %v1169
      %vm1173 = vweird.f32 %v558
      %v1174 = vadd.s32 %v1170, 3
      %v1175 = vand.u32 %v1174, 3
      %vm1176 = vcmp.lt.s32.totalorder %v1175, 2
      %vm1177 = vcmp.eq.s32.totalorder %v1175, 0
      %v1178 = vxor.u32 %v1172, 2147483648
      %v1179 = vsel %vm1177, %v1171, %v1178
      %vm1180 = vcmp.eq.s32.totalorder %v1175, 2
      %v1181 = vxor.u32 %v1171, 2147483648
      %v1182 = vsel %vm1180, %v1181, %v1172
      %v1183 = vsel %vm1176, %v1179, %v1182
      %v1184 = vsel %vm1173, nan, %v1183
      %v1185 = vand.u32 2147483647, %v559
      %vm1186 = vcmp.le.f32.partialorder %v1185, 0.7853982
      %vm1187 = vcmp.lt.s32.totalorder %v559, 0
      %v1188 = vand.u32 %v559, 2139095040
      %v1189 = vshrl.u32 %v1188, 23
      %v1190 = vsub.s32 %v1189, 127
      %v1191 = vand.u32 2147483647, %v559
      %v1192 = vand.u32 %v1191, 8388607
      %v1193 = vor.u32 %v1192, 8388608
      %v1194 = vsub.s32 0, %v1193
      %v1195 = vadd.s32 %v1190, 1
      %vm1196 = vcmp.gt.s32.totalorder %v1195, 0
      %v1197 = vsel %vm1196, %v1195, 0
      %v1198 = vshrl.u32 %v1197, 5
      %v1199 = vand.u32 %v1197, 31
      %v1200 = vsub.s32 32, %v1199
      %v1201 = vshrl.u32 683565275, %v1200
      %v1202 = vshll.u32 683565275, %v1199
      %v1203 = vshrl.u32 2475754826, %v1200
      %v1204 = vor.u32 %v1202, %v1203
      %v1205 = vshll.u32 2475754826, %v1199
      %v1206 = vshrl.u32 2131351028, %v1200
      %v1207 = vor.u32 %v1205, %v1206
      %v1208 = vshll.u32 2131351028, %v1199
      %v1209 = vshrl.u32 2102212464, %v1200
      %v1210 = vor.u32 %v1208, %v1209
      %v1211 = vshll.u32 2102212464, %v1199
      %v1212 = vshrl.u32 920167782, %v1200
      %v1213 = vor.u32 %v1211, %v1212
      %v1214 = vshll.u32 920167782, %v1199
      %v1215 = vshrl.u32 1326507024, %v1200
      %v1216 = vor.u32 %v1214, %v1215
      %vm1217 = vcmp.lt.s32.totalorder %v1198, 1
      %vm1218 = vcmp.lt.s32.totalorder %v1198, 2
      %vm1219 = vcmp.lt.s32.totalorder %v1198, 3
      %vm1220 = vcmp.lt.s32.totalorder %v1198, 4
      %v1221 = vsel %vm1217, %v1201, %v1204
      %v1222 = vsel %vm1220, %v1210, 2102212464
      %v1223 = vsel %vm1219, %v1207, %v1222
      %v1224 = vsel %vm1218, %v1221, %v1223
      %v1225 = vsel %vm1217, %v1204, %v1207
      %v1226 = vsel %vm1220, %v1213, 920167782
      %v1227 = vsel %vm1219, %v1210, %v1226
      %v1228 = vsel %vm1218, %v1225, %v1227
      %v1229 = vsel %vm1217, %v1207, %v1210
      %v1230 = vsel %vm1220, %v1216, 1326507024
      %v1231 = vsel %vm1219, %v1213, %v1230
      %v1232 = vsel %vm1218, %v1229, %v1231
      %v1233 = vshll.u32 %v1193, 8
      %v1234 = vmul.u32.u64.compose %v1233, %v1232
      %v1235 = vextract.low.u32 %v1234
      %v1236 = vextract.high.u32 %v1234
      %v1237 = vmul.u32.u64.compose %v1233, %v1228
      %v1238 = vextract.low.u32 %v1237
      %v1239 = vextract.high.u32 %v1237
      %v1240 = vmul.u32 %v1233, %v1224
      %v1241 = vadd.s32 %v1236, %v1238
      %vm1242 = vc.u32 %v1236, %v1238
      %v1243 = vadd.s32 %v1239, 1
      %v1244 = vsel %vm1242, %v1243, %v1239
      %v1245 = vadd.s32 %v1240, %v1244
      %v1246 = vadd.s32 %v1245, 536870912
      %v1247 = vshrl.u32 %v1246, 30
      %v1248 = vshll.u32 %v1247, 30
      %v1249 = vsub.s32 %v1245, %v1248
      %vm1250 = vcmp.lt.s32.totalorder %v1249, 0
      %v1251 = vsub.s32 0, %v1249
      %v1252 = vsel %vm1250, %v1251, %v1249
      %v1253 = vclz %v1252
      %v1254 = vsub.s32 %v1253, 2
      %vm1255 = vcmp.gt.s32.totalorder 0, %v1254
      %v1256 = vsel %vm1255, 0, %v1254
      %v1257 = vsub.s32 32, %v1256
      %v1258 = vshll.u32 %v1249, %v1256
      %v1259 = vshrl.u32 %v1241, %v1257
      %v1260 = vor.u32 %v1258, %v1259
      %v1261 = vsub.s32 4294967266, %v1256
      %v1262 = vadd.s32 %v1261, 127
      %v1263 = vshll.u32 %v1262, 23
      %v1264 = vor.u32 4788187, %v1263
      %v1265 = vand.u32 2147483647, %v1264
      %v1267 = vcvt.s32.f32 %v1260
      %v1268 = vmul.f32 %v1267, %v1265
      %v1269 = vxor.u32 %v1268, 2147483648
      %v1270 = vsel %vm1187, %v1269, %v1268
      %v1271 = vsub.s32 4, %v1247
      %v1272 = vsel %vm1187, %v1271, %v1247
      %v1273 = vsel %vm1186, %v559, %v1270
      %v1274 = vsel %vm1186, 0, %v1272
      %v1275 = vcosq.f32.pop %v1273
      %v1276 = vsinq.f32.pop %v1273
      %vm1277 = vweird.f32 %v559
      %v1278 = vadd.s32 %v1274, 3
      %v1279 = vand.u32 %v1278, 3
      %vm1280 = vcmp.lt.s32.totalorder %v1279, 2
      %vm1281 = vcmp.eq.s32.totalorder %v1279, 0
      %v1282 = vxor.u32 %v1276, 2147483648
      %v1283 = vsel %vm1281, %v1275, %v1282
      %vm1284 = vcmp.eq.s32.totalorder %v1279, 2
      %v1285 = vxor.u32 %v1275, 2147483648
      %v1286 = vsel %vm1284, %v1285, %v1276
      %v1287 = vsel %vm1280, %v1283, %v1286
      %v1288 = vsel %vm1277, nan, %v1287
      %v1289 = vand.u32 2147483647, %v560
      %vm1290 = vcmp.le.f32.partialorder %v1289, 0.7853982
      %vm1291 = vcmp.lt.s32.totalorder %v560, 0
      %v1292 = vand.u32 %v560, 2139095040
      %v1293 = vshrl.u32 %v1292, 23
      %v1294 = vsub.s32 %v1293, 127
      %v1295 = vand.u32 2147483647, %v560
      %v1296 = vand.u32 %v1295, 8388607
      %v1297 = vor.u32 %v1296, 8388608
      %v1298 = vsub.s32 0, %v1297
      %v1299 = vadd.s32 %v1294, 1
      %vm1300 = vcmp.gt.s32.totalorder %v1299, 0
      %v1301 = vsel %vm1300, %v1299, 0
      %v1302 = vshrl.u32 %v1301, 5
      %v1303 = vand.u32 %v1301, 31
      %v1304 = vsub.s32 32, %v1303
      %v1305 = vshrl.u32 683565275, %v1304
      %v1306 = vshll.u32 683565275, %v1303
      %v1307 = vshrl.u32 2475754826, %v1304
      %v1308 = vor.u32 %v1306, %v1307
      %v1309 = vshll.u32 2475754826, %v1303
      %v1310 = vshrl.u32 2131351028, %v1304
      %v1311 = vor.u32 %v1309, %v1310
      %v1312 = vshll.u32 2131351028, %v1303
      %v1313 = vshrl.u32 2102212464, %v1304
      %v1314 = vor.u32 %v1312, %v1313
      %v1315 = vshll.u32 2102212464, %v1303
      %v1316 = vshrl.u32 920167782, %v1304
      %v1317 = vor.u32 %v1315, %v1316
      %v1318 = vshll.u32 920167782, %v1303
      %v1319 = vshrl.u32 1326507024, %v1304
      %v1320 = vor.u32 %v1318, %v1319
      %vm1321 = vcmp.lt.s32.totalorder %v1302, 1
      %vm1322 = vcmp.lt.s32.totalorder %v1302, 2
      %vm1323 = vcmp.lt.s32.totalorder %v1302, 3
      %vm1324 = vcmp.lt.s32.totalorder %v1302, 4
      %v1325 = vsel %vm1321, %v1305, %v1308
      %v1326 = vsel %vm1324, %v1314, 2102212464
      %v1327 = vsel %vm1323, %v1311, %v1326
      %v1328 = vsel %vm1322, %v1325, %v1327
      %v1329 = vsel %vm1321, %v1308, %v1311
      %v1330 = vsel %vm1324, %v1317, 920167782
      %v1331 = vsel %vm1323, %v1314, %v1330
      %v1332 = vsel %vm1322, %v1329, %v1331
      %v1333 = vsel %vm1321, %v1311, %v1314
      %v1334 = vsel %vm1324, %v1320, 1326507024
      %v1335 = vsel %vm1323, %v1317, %v1334
      %v1336 = vsel %vm1322, %v1333, %v1335
      %v1337 = vshll.u32 %v1297, 8
      %v1338 = vmul.u32.u64.compose %v1337, %v1336
      %v1339 = vextract.low.u32 %v1338
      %v1340 = vextract.high.u32 %v1338
      %v1341 = vmul.u32.u64.compose %v1337, %v1332
      %v1342 = vextract.low.u32 %v1341
      %v1343 = vextract.high.u32 %v1341
      %v1344 = vmul.u32 %v1337, %v1328
      %v1345 = vadd.s32 %v1340, %v1342
      %vm1346 = vc.u32 %v1340, %v1342
      %v1347 = vadd.s32 %v1343, 1
      %v1348 = vsel %vm1346, %v1347, %v1343
      %v1349 = vadd.s32 %v1344, %v1348
      %v1350 = vadd.s32 %v1349, 536870912
      %v1351 = vshrl.u32 %v1350, 30
      %v1352 = vshll.u32 %v1351, 30
      %v1353 = vsub.s32 %v1349, %v1352
      %vm1354 = vcmp.lt.s32.totalorder %v1353, 0
      %v1355 = vsub.s32 0, %v1353
      %v1356 = vsel %vm1354, %v1355, %v1353
      %v1357 = vclz %v1356
      %v1358 = vsub.s32 %v1357, 2
      %vm1359 = vcmp.gt.s32.totalorder 0, %v1358
      %v1360 = vsel %vm1359, 0, %v1358
      %v1361 = vsub.s32 32, %v1360
      %v1362 = vshll.u32 %v1353, %v1360
      %v1363 = vshrl.u32 %v1345, %v1361
      %v1364 = vor.u32 %v1362, %v1363
      %v1365 = vsub.s32 4294967266, %v1360
      %v1366 = vadd.s32 %v1365, 127
      %v1367 = vshll.u32 %v1366, 23
      %v1368 = vor.u32 4788187, %v1367
      %v1369 = vand.u32 2147483647, %v1368
      %v1371 = vcvt.s32.f32 %v1364
      %v1372 = vmul.f32 %v1371, %v1369
      %v1373 = vxor.u32 %v1372, 2147483648
      %v1374 = vsel %vm1291, %v1373, %v1372
      %v1375 = vsub.s32 4, %v1351
      %v1376 = vsel %vm1291, %v1375, %v1351
      %v1377 = vsel %vm1290, %v560, %v1374
      %v1378 = vsel %vm1290, 0, %v1376
      %v1379 = vcosq.f32.pop %v1377
      %v1380 = vsinq.f32.pop %v1377
      %vm1381 = vweird.f32 %v560
      %v1382 = vadd.s32 %v1378, 3
      %v1383 = vand.u32 %v1382, 3
      %vm1384 = vcmp.lt.s32.totalorder %v1383, 2
      %vm1385 = vcmp.eq.s32.totalorder %v1383, 0
      %v1386 = vxor.u32 %v1380, 2147483648
      %v1387 = vsel %vm1385, %v1379, %v1386
      %vm1388 = vcmp.eq.s32.totalorder %v1383, 2
      %v1389 = vxor.u32 %v1379, 2147483648
      %v1390 = vsel %vm1388, %v1389, %v1380
      %v1391 = vsel %vm1384, %v1387, %v1390
      %v1392 = vsel %vm1381, nan, %v1391
      %v1393 = vld [vmem:[%s3] sm:$0xf]
      %v1394 = vld [vmem:[%s3 + $0x4] sm:$0xf]
      %v1395 = vld [vmem:[%s3 + $0x8] sm:$0xf]
      %v1396 = vld [vmem:[%s3 + $0xc] sm:$0xf]
      %v1397 = vld [vmem:[%s4] sm:$0xff]
      %v1398 = vld [vmem:[%s4 + $0x8] sm:$0xff]
      %v1399 = vld [vmem:[%s4 + $0x10] sm:$0xff]
      %v1400 = vld [vmem:[%s4 + $0x18] sm:$0xff]
      %v1401 = vpack.c.bf16 %v872, %v664
      %v1402 = vpack.c.bf16 %v976, %v768
      %v1403 = vpack.c.bf16 %v1288, %v1080
      %v1404 = vpack.c.bf16 %v1392, %v1184
      %1406 = vset.pattern.permute.xlu0 0
      %1407 = vperm.xlu0 %1406, %v1397
      %v1408 = vpop.permute.xlu0 %1407
      %1411 = vset.pattern.permute.xlu0 0
      %1412 = vperm.xlu0 %1411, %v1398
      %v1413 = vpop.permute.xlu0 %1412
      %1416 = vset.pattern.permute.xlu0 0
      %1417 = vperm.xlu0 %1416, %v1399
      %v1418 = vpop.permute.xlu0 %1417
      %1421 = vset.pattern.permute.xlu0 0
      %1422 = vperm.xlu0 %1421, %v1400
      %v1423 = vpop.permute.xlu0 %1422
      %v1429 = vunpack.c.l.b16 %v1393
      %v1430 = vunpack.c.l.b16 %v1394
      %v1431 = vunpack.c.l.b16 %v1395
      %v1432 = vunpack.c.l.b16 %v1396
      %v1433 = vpack.c.b16 %v1430, %v1429
      %v1434 = vpack.c.b16 %v1432, %v1431
      %vm1435 = vcmask 261120
      %v1437 = vsel %vm1435, %v1433, 0
      %v1440 = vsel %vm1435, %v1434, 0
      %1442 = vmatprep.subr.bf16.mxu0 %v1402
      %1443 = vmatpush1.bf16.msra.mxu0 %v1401
      %1444 = vmatprep.subr.bf16.mxu0 %v1404
      %1445 = vmatpush1.bf16.msra.mxu0 %v1403
      %1446 = vmatprep.subr.bf16.mxu0 0
      %1447 = vmatpush1.bf16.msra.mxu0 0
      %1448 = vmatprep.subr.bf16.mxu0 0
      %1449 = vmatpush1.bf16.msra.mxu0 0
      %1450 = vmatprep.subr.bf16.mxu0 0
      %1451 = vmatpush1.bf16.msra.mxu0 0
      %1452 = vmatprep.subr.bf16.mxu0 0
      %1453 = vmatpush1.bf16.msra.mxu0 0
      %1454 = vmatprep.subr.bf16.mxu0 0
      %1455 = vmatpush1.bf16.msra.mxu0 0
      %1456 = vmatprep.subr.bf16.mxu0 0
      %1457 = vmatpush1.bf16.msra.mxu0 0
      %1458 = vmatprep.subr.bf16.mxu0 0
      %1459 = vmatpush1.bf16.msra.mxu0 0
      %1460 = vmatprep.subr.bf16.mxu0 0
      %1461 = vmatpush1.bf16.msra.mxu0 0
      %1462 = vmatprep.subr.bf16.mxu0 0
      %1463 = vmatpush1.bf16.msra.mxu0 0
      %1464 = vmatprep.subr.bf16.mxu0 0
      %1465 = vmatpush1.bf16.msra.mxu0 0
      %1466 = vmatprep.subr.bf16.mxu0 0
      %1467 = vmatpush1.bf16.msra.mxu0 0
      %1468 = vmatprep.subr.bf16.mxu0 0
      %1469 = vmatpush1.bf16.msra.mxu0 0
      %1470 = vmatprep.subr.bf16.mxu0 0
      %1471 = vmatpush1.bf16.msra.mxu0 0
      %1472 = vmatprep.subr.bf16.mxu0 0
      %1473 = vmatpush1.bf16.msra.mxu0 0
      %1474 = vmatprep.mubr.bf16.mxu0 0
      %1475 = vmatmul.mubr.bf16.gmra.mrb[0].mxu0 %v1437
      %v1476 = vpop.f32.mrb[0].mxu0
      %v1477 = vadd.f32 %v1408, %v1476
      %v1478 = vpop.f32.mrb[0].mxu0
      %v1479 = vadd.f32 %v1408, %v1478
      %v1480 = vpop.f32.mrb[0].mxu0
      %v1481 = vadd.f32 %v1413, %v1480
      %v1482 = vpop.f32.mrb[0].mxu0
      %v1483 = vadd.f32 %v1413, %v1482
      %1484 = vmatprep.mubr.bf16.mxu0 0
      %1485 = vmatmul.mubr.bf16.gmra.mrb[0].mxu0 %v1440
      %v1486 = vpop.f32.mrb[0].mxu0
      %v1487 = vadd.f32 %v1418, %v1486
      %v1488 = vpop.f32.mrb[0].mxu0
      %v1489 = vadd.f32 %v1418, %v1488
      %v1490 = vpop.f32.mrb[0].mxu0
      %v1491 = vadd.f32 %v1423, %v1490
      %v1492 = vpop.f32.mrb[0].mxu0
      %v1493 = vadd.f32 %v1423, %v1492
      %1494 = vdwg.mxu0
      %v1495 = vand.u32 2147483647, %v1477
      %vm1496 = vcmp.le.f32.partialorder %v1495, 0.7853982
      %vm1497 = vcmp.lt.s32.totalorder %v1477, 0
      %v1498 = vand.u32 %v1477, 2139095040
      %v1499 = vshrl.u32 %v1498, 23
      %v1500 = vsub.s32 %v1499, 127
      %v1501 = vand.u32 2147483647, %v1477
      %v1502 = vand.u32 %v1501, 8388607
      %v1503 = vor.u32 %v1502, 8388608
      %v1504 = vsub.s32 0, %v1503
      %v1505 = vadd.s32 %v1500, 1
      %vm1506 = vcmp.gt.s32.totalorder %v1505, 0
      %v1507 = vsel %vm1506, %v1505, 0
      %v1508 = vshrl.u32 %v1507, 5
      %v1509 = vand.u32 %v1507, 31
      %v1510 = vsub.s32 32, %v1509
      %v1511 = vshrl.u32 683565275, %v1510
      %v1512 = vshll.u32 683565275, %v1509
      %v1513 = vshrl.u32 2475754826, %v1510
      %v1514 = vor.u32 %v1512, %v1513
      %v1515 = vshll.u32 2475754826, %v1509
      %v1516 = vshrl.u32 2131351028, %v1510
      %v1517 = vor.u32 %v1515, %v1516
      %v1518 = vshll.u32 2131351028, %v1509
      %v1519 = vshrl.u32 2102212464, %v1510
      %v1520 = vor.u32 %v1518, %v1519
      %v1521 = vshll.u32 2102212464, %v1509
      %v1522 = vshrl.u32 920167782, %v1510
      %v1523 = vor.u32 %v1521, %v1522
      %v1524 = vshll.u32 920167782, %v1509
      %v1525 = vshrl.u32 1326507024, %v1510
      %v1526 = vor.u32 %v1524, %v1525
      %vm1527 = vcmp.lt.s32.totalorder %v1508, 1
      %vm1528 = vcmp.lt.s32.totalorder %v1508, 2
      %vm1529 = vcmp.lt.s32.totalorder %v1508, 3
      %vm1530 = vcmp.lt.s32.totalorder %v1508, 4
      %v1531 = vsel %vm1527, %v1511, %v1514
      %v1532 = vsel %vm1530, %v1520, 2102212464
      %v1533 = vsel %vm1529, %v1517, %v1532
      %v1534 = vsel %vm1528, %v1531, %v1533
      %v1535 = vsel %vm1527, %v1514, %v1517
      %v1536 = vsel %vm1530, %v1523, 920167782
      %v1537 = vsel %vm1529, %v1520, %v1536
      %v1538 = vsel %vm1528, %v1535, %v1537
      %v1539 = vsel %vm1527, %v1517, %v1520
      %v1540 = vsel %vm1530, %v1526, 1326507024
      %v1541 = vsel %vm1529, %v1523, %v1540
      %v1542 = vsel %vm1528, %v1539, %v1541
      %v1543 = vshll.u32 %v1503, 8
      %v1544 = vmul.u32.u64.compose %v1543, %v1542
      %v1545 = vextract.low.u32 %v1544
      %v1546 = vextract.high.u32 %v1544
      %v1547 = vmul.u32.u64.compose %v1543, %v1538
      %v1548 = vextract.low.u32 %v1547
      %v1549 = vextract.high.u32 %v1547
      %v1550 = vmul.u32 %v1543, %v1534
      %v1551 = vadd.s32 %v1546, %v1548
      %vm1552 = vc.u32 %v1546, %v1548
      %v1553 = vadd.s32 %v1549, 1
      %v1554 = vsel %vm1552, %v1553, %v1549
      %v1555 = vadd.s32 %v1550, %v1554
      %v1556 = vadd.s32 %v1555, 536870912
      %v1557 = vshrl.u32 %v1556, 30
      %v1558 = vshll.u32 %v1557, 30
      %v1559 = vsub.s32 %v1555, %v1558
      %vm1560 = vcmp.lt.s32.totalorder %v1559, 0
      %v1561 = vsub.s32 0, %v1559
      %v1562 = vsel %vm1560, %v1561, %v1559
      %v1563 = vclz %v1562
      %v1564 = vsub.s32 %v1563, 2
      %vm1565 = vcmp.gt.s32.totalorder 0, %v1564
      %v1566 = vsel %vm1565, 0, %v1564
      %v1567 = vsub.s32 32, %v1566
      %v1568 = vshll.u32 %v1559, %v1566
      %v1569 = vshrl.u32 %v1551, %v1567
      %v1570 = vor.u32 %v1568, %v1569
      %v1571 = vsub.s32 4294967266, %v1566
      %v1572 = vadd.s32 %v1571, 127
      %v1573 = vshll.u32 %v1572, 23
      %v1574 = vor.u32 4788187, %v1573
      %v1575 = vand.u32 2147483647, %v1574
      %v1577 = vcvt.s32.f32 %v1570
      %v1578 = vmul.f32 %v1577, %v1575
      %v1579 = vxor.u32 %v1578, 2147483648
      %v1580 = vsel %vm1497, %v1579, %v1578
      %v1581 = vsub.s32 4, %v1557
      %v1582 = vsel %vm1497, %v1581, %v1557
      %v1583 = vsel %vm1496, %v1477, %v1580
      %v1584 = vsel %vm1496, 0, %v1582
      %v1585 = vcosq.f32.pop %v1583
      %v1586 = vsinq.f32.pop %v1583
      %vm1587 = vweird.f32 %v1477
      %v1588 = vadd.s32 %v1584, 3
      %v1589 = vand.u32 %v1588, 3
      %vm1590 = vcmp.lt.s32.totalorder %v1589, 2
      %vm1591 = vcmp.eq.s32.totalorder %v1589, 0
      %v1592 = vxor.u32 %v1586, 2147483648
      %v1593 = vsel %vm1591, %v1585, %v1592
      %vm1594 = vcmp.eq.s32.totalorder %v1589, 2
      %v1595 = vxor.u32 %v1585, 2147483648
      %v1596 = vsel %vm1594, %v1595, %v1586
      %v1597 = vsel %vm1590, %v1593, %v1596
      %v1598 = vsel %vm1587, nan, %v1597
      %v1599 = vand.u32 2147483647, %v1479
      %vm1600 = vcmp.le.f32.partialorder %v1599, 0.7853982
      %vm1601 = vcmp.lt.s32.totalorder %v1479, 0
      %v1602 = vand.u32 %v1479, 2139095040
      %v1603 = vshrl.u32 %v1602, 23
      %v1604 = vsub.s32 %v1603, 127
      %v1605 = vand.u32 2147483647, %v1479
      %v1606 = vand.u32 %v1605, 8388607
      %v1607 = vor.u32 %v1606, 8388608
      %v1608 = vsub.s32 0, %v1607
      %v1609 = vadd.s32 %v1604, 1
      %vm1610 = vcmp.gt.s32.totalorder %v1609, 0
      %v1611 = vsel %vm1610, %v1609, 0
      %v1612 = vshrl.u32 %v1611, 5
      %v1613 = vand.u32 %v1611, 31
      %v1614 = vsub.s32 32, %v1613
      %v1615 = vshrl.u32 683565275, %v1614
      %v1616 = vshll.u32 683565275, %v1613
      %v1617 = vshrl.u32 2475754826, %v1614
      %v1618 = vor.u32 %v1616, %v1617
      %v1619 = vshll.u32 2475754826, %v1613
      %v1620 = vshrl.u32 2131351028, %v1614
      %v1621 = vor.u32 %v1619, %v1620
      %v1622 = vshll.u32 2131351028, %v1613
      %v1623 = vshrl.u32 2102212464, %v1614
      %v1624 = vor.u32 %v1622, %v1623
      %v1625 = vshll.u32 2102212464, %v1613
      %v1626 = vshrl.u32 920167782, %v1614
      %v1627 = vor.u32 %v1625, %v1626
      %v1628 = vshll.u32 920167782, %v1613
      %v1629 = vshrl.u32 1326507024, %v1614
      %v1630 = vor.u32 %v1628, %v1629
      %vm1631 = vcmp.lt.s32.totalorder %v1612, 1
      %vm1632 = vcmp.lt.s32.totalorder %v1612, 2
      %vm1633 = vcmp.lt.s32.totalorder %v1612, 3
      %vm1634 = vcmp.lt.s32.totalorder %v1612, 4
      %v1635 = vsel %vm1631, %v1615, %v1618
      %v1636 = vsel %vm1634, %v1624, 2102212464
      %v1637 = vsel %vm1633, %v1621, %v1636
      %v1638 = vsel %vm1632, %v1635, %v1637
      %v1639 = vsel %vm1631, %v1618, %v1621
      %v1640 = vsel %vm1634, %v1627, 920167782
      %v1641 = vsel %vm1633, %v1624, %v1640
      %v1642 = vsel %vm1632, %v1639, %v1641
      %v1643 = vsel %vm1631, %v1621, %v1624
      %v1644 = vsel %vm1634, %v1630, 1326507024
      %v1645 = vsel %vm1633, %v1627, %v1644
      %v1646 = vsel %vm1632, %v1643, %v1645
      %v1647 = vshll.u32 %v1607, 8
      %v1648 = vmul.u32.u64.compose %v1647, %v1646
      %v1649 = vextract.low.u32 %v1648
      %v1650 = vextract.high.u32 %v1648
      %v1651 = vmul.u32.u64.compose %v1647, %v1642
      %v1652 = vextract.low.u32 %v1651
      %v1653 = vextract.high.u32 %v1651
      %v1654 = vmul.u32 %v1647, %v1638
      %v1655 = vadd.s32 %v1650, %v1652
      %vm1656 = vc.u32 %v1650, %v1652
      %v1657 = vadd.s32 %v1653, 1
      %v1658 = vsel %vm1656, %v1657, %v1653
      %v1659 = vadd.s32 %v1654, %v1658
      %v1660 = vadd.s32 %v1659, 536870912
      %v1661 = vshrl.u32 %v1660, 30
      %v1662 = vshll.u32 %v1661, 30
      %v1663 = vsub.s32 %v1659, %v1662
      %vm1664 = vcmp.lt.s32.totalorder %v1663, 0
      %v1665 = vsub.s32 0, %v1663
      %v1666 = vsel %vm1664, %v1665, %v1663
      %v1667 = vclz %v1666
      %v1668 = vsub.s32 %v1667, 2
      %vm1669 = vcmp.gt.s32.totalorder 0, %v1668
      %v1670 = vsel %vm1669, 0, %v1668
      %v1671 = vsub.s32 32, %v1670
      %v1672 = vshll.u32 %v1663, %v1670
      %v1673 = vshrl.u32 %v1655, %v1671
      %v1674 = vor.u32 %v1672, %v1673
      %v1675 = vsub.s32 4294967266, %v1670
      %v1676 = vadd.s32 %v1675, 127
      %v1677 = vshll.u32 %v1676, 23
      %v1678 = vor.u32 4788187, %v1677
      %v1679 = vand.u32 2147483647, %v1678
      %v1681 = vcvt.s32.f32 %v1674
      %v1682 = vmul.f32 %v1681, %v1679
      %v1683 = vxor.u32 %v1682, 2147483648
      %v1684 = vsel %vm1601, %v1683, %v1682
      %v1685 = vsub.s32 4, %v1661
      %v1686 = vsel %vm1601, %v1685, %v1661
      %v1687 = vsel %vm1600, %v1479, %v1684
      %v1688 = vsel %vm1600, 0, %v1686
      %v1689 = vcosq.f32.pop %v1687
      %v1690 = vsinq.f32.pop %v1687
      %vm1691 = vweird.f32 %v1479
      %v1692 = vadd.s32 %v1688, 3
      %v1693 = vand.u32 %v1692, 3
      %vm1694 = vcmp.lt.s32.totalorder %v1693, 2
      %vm1695 = vcmp.eq.s32.totalorder %v1693, 0
      %v1696 = vxor.u32 %v1690, 2147483648
      %v1697 = vsel %vm1695, %v1689, %v1696
      %vm1698 = vcmp.eq.s32.totalorder %v1693, 2
      %v1699 = vxor.u32 %v1689, 2147483648
      %v1700 = vsel %vm1698, %v1699, %v1690
      %v1701 = vsel %vm1694, %v1697, %v1700
      %v1702 = vsel %vm1691, nan, %v1701
      %v1703 = vand.u32 2147483647, %v1481
      %vm1704 = vcmp.le.f32.partialorder %v1703, 0.7853982
      %vm1705 = vcmp.lt.s32.totalorder %v1481, 0
      %v1706 = vand.u32 %v1481, 2139095040
      %v1707 = vshrl.u32 %v1706, 23
      %v1708 = vsub.s32 %v1707, 127
      %v1709 = vand.u32 2147483647, %v1481
      %v1710 = vand.u32 %v1709, 8388607
      %v1711 = vor.u32 %v1710, 8388608
      %v1712 = vsub.s32 0, %v1711
      %v1713 = vadd.s32 %v1708, 1
      %vm1714 = vcmp.gt.s32.totalorder %v1713, 0
      %v1715 = vsel %vm1714, %v1713, 0
      %v1716 = vshrl.u32 %v1715, 5
      %v1717 = vand.u32 %v1715, 31
      %v1718 = vsub.s32 32, %v1717
      %v1719 = vshrl.u32 683565275, %v1718
      %v1720 = vshll.u32 683565275, %v1717
      %v1721 = vshrl.u32 2475754826, %v1718
      %v1722 = vor.u32 %v1720, %v1721
      %v1723 = vshll.u32 2475754826, %v1717
      %v1724 = vshrl.u32 2131351028, %v1718
      %v1725 = vor.u32 %v1723, %v1724
      %v1726 = vshll.u32 2131351028, %v1717
      %v1727 = vshrl.u32 2102212464, %v1718
      %v1728 = vor.u32 %v1726, %v1727
      %v1729 = vshll.u32 2102212464, %v1717
      %v1730 = vshrl.u32 920167782, %v1718
      %v1731 = vor.u32 %v1729, %v1730
      %v1732 = vshll.u32 920167782, %v1717
      %v1733 = vshrl.u32 1326507024, %v1718
      %v1734 = vor.u32 %v1732, %v1733
      %vm1735 = vcmp.lt.s32.totalorder %v1716, 1
      %vm1736 = vcmp.lt.s32.totalorder %v1716, 2
      %vm1737 = vcmp.lt.s32.totalorder %v1716, 3
      %vm1738 = vcmp.lt.s32.totalorder %v1716, 4
      %v1739 = vsel %vm1735, %v1719, %v1722
      %v1740 = vsel %vm1738, %v1728, 2102212464
      %v1741 = vsel %vm1737, %v1725, %v1740
      %v1742 = vsel %vm1736, %v1739, %v1741
      %v1743 = vsel %vm1735, %v1722, %v1725
      %v1744 = vsel %vm1738, %v1731, 920167782
      %v1745 = vsel %vm1737, %v1728, %v1744
      %v1746 = vsel %vm1736, %v1743, %v1745
      %v1747 = vsel %vm1735, %v1725, %v1728
      %v1748 = vsel %vm1738, %v1734, 1326507024
      %v1749 = vsel %vm1737, %v1731, %v1748
      %v1750 = vsel %vm1736, %v1747, %v1749
      %v1751 = vshll.u32 %v1711, 8
      %v1752 = vmul.u32.u64.compose %v1751, %v1750
      %v1753 = vextract.low.u32 %v1752
      %v1754 = vextract.high.u32 %v1752
      %v1755 = vmul.u32.u64.compose %v1751, %v1746
      %v1756 = vextract.low.u32 %v1755
      %v1757 = vextract.high.u32 %v1755
      %v1758 = vmul.u32 %v1751, %v1742
      %v1759 = vadd.s32 %v1754, %v1756
      %vm1760 = vc.u32 %v1754, %v1756
      %v1761 = vadd.s32 %v1757, 1
      %v1762 = vsel %vm1760, %v1761, %v1757
      %v1763 = vadd.s32 %v1758, %v1762
      %v1764 = vadd.s32 %v1763, 536870912
      %v1765 = vshrl.u32 %v1764, 30
      %v1766 = vshll.u32 %v1765, 30
      %v1767 = vsub.s32 %v1763, %v1766
      %vm1768 = vcmp.lt.s32.totalorder %v1767, 0
      %v1769 = vsub.s32 0, %v1767
      %v1770 = vsel %vm1768, %v1769, %v1767
      %v1771 = vclz %v1770
      %v1772 = vsub.s32 %v1771, 2
      %vm1773 = vcmp.gt.s32.totalorder 0, %v1772
      %v1774 = vsel %vm1773, 0, %v1772
      %v1775 = vsub.s32 32, %v1774
      %v1776 = vshll.u32 %v1767, %v1774
      %v1777 = vshrl.u32 %v1759, %v1775
      %v1778 = vor.u32 %v1776, %v1777
      %v1779 = vsub.s32 4294967266, %v1774
      %v1780 = vadd.s32 %v1779, 127
      %v1781 = vshll.u32 %v1780, 23
      %v1782 = vor.u32 4788187, %v1781
      %v1783 = vand.u32 2147483647, %v1782
      %v1785 = vcvt.s32.f32 %v1778
      %v1786 = vmul.f32 %v1785, %v1783
      %v1787 = vxor.u32 %v1786, 2147483648
      %v1788 = vsel %vm1705, %v1787, %v1786
      %v1789 = vsub.s32 4, %v1765
      %v1790 = vsel %vm1705, %v1789, %v1765
      %v1791 = vsel %vm1704, %v1481, %v1788
      %v1792 = vsel %vm1704, 0, %v1790
      %v1793 = vcosq.f32.pop %v1791
      %v1794 = vsinq.f32.pop %v1791
      %vm1795 = vweird.f32 %v1481
      %v1796 = vadd.s32 %v1792, 3
      %v1797 = vand.u32 %v1796, 3
      %vm1798 = vcmp.lt.s32.totalorder %v1797, 2
      %vm1799 = vcmp.eq.s32.totalorder %v1797, 0
      %v1800 = vxor.u32 %v1794, 2147483648
      %v1801 = vsel %vm1799, %v1793, %v1800
      %vm1802 = vcmp.eq.s32.totalorder %v1797, 2
      %v1803 = vxor.u32 %v1793, 2147483648
      %v1804 = vsel %vm1802, %v1803, %v1794
      %v1805 = vsel %vm1798, %v1801, %v1804
      %v1806 = vsel %vm1795, nan, %v1805
      %v1807 = vand.u32 2147483647, %v1483
      %vm1808 = vcmp.le.f32.partialorder %v1807, 0.7853982
      %vm1809 = vcmp.lt.s32.totalorder %v1483, 0
      %v1810 = vand.u32 %v1483, 2139095040
      %v1811 = vshrl.u32 %v1810, 23
      %v1812 = vsub.s32 %v1811, 127
      %v1813 = vand.u32 2147483647, %v1483
      %v1814 = vand.u32 %v1813, 8388607
      %v1815 = vor.u32 %v1814, 8388608
      %v1816 = vsub.s32 0, %v1815
      %v1817 = vadd.s32 %v1812, 1
      %vm1818 = vcmp.gt.s32.totalorder %v1817, 0
      %v1819 = vsel %vm1818, %v1817, 0
      %v1820 = vshrl.u32 %v1819, 5
      %v1821 = vand.u32 %v1819, 31
      %v1822 = vsub.s32 32, %v1821
      %v1823 = vshrl.u32 683565275, %v1822
      %v1824 = vshll.u32 683565275, %v1821
      %v1825 = vshrl.u32 2475754826, %v1822
      %v1826 = vor.u32 %v1824, %v1825
      %v1827 = vshll.u32 2475754826, %v1821
      %v1828 = vshrl.u32 2131351028, %v1822
      %v1829 = vor.u32 %v1827, %v1828
      %v1830 = vshll.u32 2131351028, %v1821
      %v1831 = vshrl.u32 2102212464, %v1822
      %v1832 = vor.u32 %v1830, %v1831
      %v1833 = vshll.u32 2102212464, %v1821
      %v1834 = vshrl.u32 920167782, %v1822
      %v1835 = vor.u32 %v1833, %v1834
      %v1836 = vshll.u32 920167782, %v1821
      %v1837 = vshrl.u32 1326507024, %v1822
      %v1838 = vor.u32 %v1836, %v1837
      %vm1839 = vcmp.lt.s32.totalorder %v1820, 1
      %vm1840 = vcmp.lt.s32.totalorder %v1820, 2
      %vm1841 = vcmp.lt.s32.totalorder %v1820, 3
      %vm1842 = vcmp.lt.s32.totalorder %v1820, 4
      %v1843 = vsel %vm1839, %v1823, %v1826
      %v1844 = vsel %vm1842, %v1832, 2102212464
      %v1845 = vsel %vm1841, %v1829, %v1844
      %v1846 = vsel %vm1840, %v1843, %v1845
      %v1847 = vsel %vm1839, %v1826, %v1829
      %v1848 = vsel %vm1842, %v1835, 920167782
      %v1849 = vsel %vm1841, %v1832, %v1848
      %v1850 = vsel %vm1840, %v1847, %v1849
      %v1851 = vsel %vm1839, %v1829, %v1832
      %v1852 = vsel %vm1842, %v1838, 1326507024
      %v1853 = vsel %vm1841, %v1835, %v1852
      %v1854 = vsel %vm1840, %v1851, %v1853
      %v1855 = vshll.u32 %v1815, 8
      %v1856 = vmul.u32.u64.compose %v1855, %v1854
      %v1857 = vextract.low.u32 %v1856
      %v1858 = vextract.high.u32 %v1856
      %v1859 = vmul.u32.u64.compose %v1855, %v1850
      %v1860 = vextract.low.u32 %v1859
      %v1861 = vextract.high.u32 %v1859
      %v1862 = vmul.u32 %v1855, %v1846
      %v1863 = vadd.s32 %v1858, %v1860
      %vm1864 = vc.u32 %v1858, %v1860
      %v1865 = vadd.s32 %v1861, 1
      %v1866 = vsel %vm1864, %v1865, %v1861
      %v1867 = vadd.s32 %v1862, %v1866
      %v1868 = vadd.s32 %v1867, 536870912
      %v1869 = vshrl.u32 %v1868, 30
      %v1870 = vshll.u32 %v1869, 30
      %v1871 = vsub.s32 %v1867, %v1870
      %vm1872 = vcmp.lt.s32.totalorder %v1871, 0
      %v1873 = vsub.s32 0, %v1871
      %v1874 = vsel %vm1872, %v1873, %v1871
      %v1875 = vclz %v1874
      %v1876 = vsub.s32 %v1875, 2
      %vm1877 = vcmp.gt.s32.totalorder 0, %v1876
      %v1878 = vsel %vm1877, 0, %v1876
      %v1879 = vsub.s32 32, %v1878
      %v1880 = vshll.u32 %v1871, %v1878
      %v1881 = vshrl.u32 %v1863, %v1879
      %v1882 = vor.u32 %v1880, %v1881
      %v1883 = vsub.s32 4294967266, %v1878
      %v1884 = vadd.s32 %v1883, 127
      %v1885 = vshll.u32 %v1884, 23
      %v1886 = vor.u32 4788187, %v1885
      %v1887 = vand.u32 2147483647, %v1886
      %v1889 = vcvt.s32.f32 %v1882
      %v1890 = vmul.f32 %v1889, %v1887
      %v1891 = vxor.u32 %v1890, 2147483648
      %v1892 = vsel %vm1809, %v1891, %v1890
      %v1893 = vsub.s32 4, %v1869
      %v1894 = vsel %vm1809, %v1893, %v1869
      %v1895 = vsel %vm1808, %v1483, %v1892
      %v1896 = vsel %vm1808, 0, %v1894
      %v1897 = vcosq.f32.pop %v1895
      %v1898 = vsinq.f32.pop %v1895
      %vm1899 = vweird.f32 %v1483
      %v1900 = vadd.s32 %v1896, 3
      %v1901 = vand.u32 %v1900, 3
      %vm1902 = vcmp.lt.s32.totalorder %v1901, 2
      %vm1903 = vcmp.eq.s32.totalorder %v1901, 0
      %v1904 = vxor.u32 %v1898, 2147483648
      %v1905 = vsel %vm1903, %v1897, %v1904
      %vm1906 = vcmp.eq.s32.totalorder %v1901, 2
      %v1907 = vxor.u32 %v1897, 2147483648
      %v1908 = vsel %vm1906, %v1907, %v1898
      %v1909 = vsel %vm1902, %v1905, %v1908
      %v1910 = vsel %vm1899, nan, %v1909
      %v1911 = vand.u32 2147483647, %v1487
      %vm1912 = vcmp.le.f32.partialorder %v1911, 0.7853982
      %vm1913 = vcmp.lt.s32.totalorder %v1487, 0
      %v1914 = vand.u32 %v1487, 2139095040
      %v1915 = vshrl.u32 %v1914, 23
      %v1916 = vsub.s32 %v1915, 127
      %v1917 = vand.u32 2147483647, %v1487
      %v1918 = vand.u32 %v1917, 8388607
      %v1919 = vor.u32 %v1918, 8388608
      %v1920 = vsub.s32 0, %v1919
      %v1921 = vadd.s32 %v1916, 1
      %vm1922 = vcmp.gt.s32.totalorder %v1921, 0
      %v1923 = vsel %vm1922, %v1921, 0
      %v1924 = vshrl.u32 %v1923, 5
      %v1925 = vand.u32 %v1923, 31
      %v1926 = vsub.s32 32, %v1925
      %v1927 = vshrl.u32 683565275, %v1926
      %v1928 = vshll.u32 683565275, %v1925
      %v1929 = vshrl.u32 2475754826, %v1926
      %v1930 = vor.u32 %v1928, %v1929
      %v1931 = vshll.u32 2475754826, %v1925
      %v1932 = vshrl.u32 2131351028, %v1926
      %v1933 = vor.u32 %v1931, %v1932
      %v1934 = vshll.u32 2131351028, %v1925
      %v1935 = vshrl.u32 2102212464, %v1926
      %v1936 = vor.u32 %v1934, %v1935
      %v1937 = vshll.u32 2102212464, %v1925
      %v1938 = vshrl.u32 920167782, %v1926
      %v1939 = vor.u32 %v1937, %v1938
      %v1940 = vshll.u32 920167782, %v1925
      %v1941 = vshrl.u32 1326507024, %v1926
      %v1942 = vor.u32 %v1940, %v1941
      %vm1943 = vcmp.lt.s32.totalorder %v1924, 1
      %vm1944 = vcmp.lt.s32.totalorder %v1924, 2
      %vm1945 = vcmp.lt.s32.totalorder %v1924, 3
      %vm1946 = vcmp.lt.s32.totalorder %v1924, 4
      %v1947 = vsel %vm1943, %v1927, %v1930
      %v1948 = vsel %vm1946, %v1936, 2102212464
      %v1949 = vsel %vm1945, %v1933, %v1948
      %v1950 = vsel %vm1944, %v1947, %v1949
      %v1951 = vsel %vm1943, %v1930, %v1933
      %v1952 = vsel %vm1946, %v1939, 920167782
      %v1953 = vsel %vm1945, %v1936, %v1952
      %v1954 = vsel %vm1944, %v1951, %v1953
      %v1955 = vsel %vm1943, %v1933, %v1936
      %v1956 = vsel %vm1946, %v1942, 1326507024
      %v1957 = vsel %vm1945, %v1939, %v1956
      %v1958 = vsel %vm1944, %v1955, %v1957
      %v1959 = vshll.u32 %v1919, 8
      %v1960 = vmul.u32.u64.compose %v1959, %v1958
      %v1961 = vextract.low.u32 %v1960
      %v1962 = vextract.high.u32 %v1960
      %v1963 = vmul.u32.u64.compose %v1959, %v1954
      %v1964 = vextract.low.u32 %v1963
      %v1965 = vextract.high.u32 %v1963
      %v1966 = vmul.u32 %v1959, %v1950
      %v1967 = vadd.s32 %v1962, %v1964
      %vm1968 = vc.u32 %v1962, %v1964
      %v1969 = vadd.s32 %v1965, 1
      %v1970 = vsel %vm1968, %v1969, %v1965
      %v1971 = vadd.s32 %v1966, %v1970
      %v1972 = vadd.s32 %v1971, 536870912
      %v1973 = vshrl.u32 %v1972, 30
      %v1974 = vshll.u32 %v1973, 30
      %v1975 = vsub.s32 %v1971, %v1974
      %vm1976 = vcmp.lt.s32.totalorder %v1975, 0
      %v1977 = vsub.s32 0, %v1975
      %v1978 = vsel %vm1976, %v1977, %v1975
      %v1979 = vclz %v1978
      %v1980 = vsub.s32 %v1979, 2
      %vm1981 = vcmp.gt.s32.totalorder 0, %v1980
      %v1982 = vsel %vm1981, 0, %v1980
      %v1983 = vsub.s32 32, %v1982
      %v1984 = vshll.u32 %v1975, %v1982
      %v1985 = vshrl.u32 %v1967, %v1983
      %v1986 = vor.u32 %v1984, %v1985
      %v1987 = vsub.s32 4294967266, %v1982
      %v1988 = vadd.s32 %v1987, 127
      %v1989 = vshll.u32 %v1988, 23
      %v1990 = vor.u32 4788187, %v1989
      %v1991 = vand.u32 2147483647, %v1990
      %v1993 = vcvt.s32.f32 %v1986
      %v1994 = vmul.f32 %v1993, %v1991
      %v1995 = vxor.u32 %v1994, 2147483648
      %v1996 = vsel %vm1913, %v1995, %v1994
      %v1997 = vsub.s32 4, %v1973
      %v1998 = vsel %vm1913, %v1997, %v1973
      %v1999 = vsel %vm1912, %v1487, %v1996
      %v2000 = vsel %vm1912, 0, %v1998
      %v2001 = vcosq.f32.pop %v1999
      %v2002 = vsinq.f32.pop %v1999
      %vm2003 = vweird.f32 %v1487
      %v2004 = vadd.s32 %v2000, 3
      %v2005 = vand.u32 %v2004, 3
      %vm2006 = vcmp.lt.s32.totalorder %v2005, 2
      %vm2007 = vcmp.eq.s32.totalorder %v2005, 0
      %v2008 = vxor.u32 %v2002, 2147483648
      %v2009 = vsel %vm2007, %v2001, %v2008
      %vm2010 = vcmp.eq.s32.totalorder %v2005, 2
      %v2011 = vxor.u32 %v2001, 2147483648
      %v2012 = vsel %vm2010, %v2011, %v2002
      %v2013 = vsel %vm2006, %v2009, %v2012
      %v2014 = vsel %vm2003, nan, %v2013
      %v2015 = vand.u32 2147483647, %v1489
      %vm2016 = vcmp.le.f32.partialorder %v2015, 0.7853982
      %vm2017 = vcmp.lt.s32.totalorder %v1489, 0
      %v2018 = vand.u32 %v1489, 2139095040
      %v2019 = vshrl.u32 %v2018, 23
      %v2020 = vsub.s32 %v2019, 127
      %v2021 = vand.u32 2147483647, %v1489
      %v2022 = vand.u32 %v2021, 8388607
      %v2023 = vor.u32 %v2022, 8388608
      %v2024 = vsub.s32 0, %v2023
      %v2025 = vadd.s32 %v2020, 1
      %vm2026 = vcmp.gt.s32.totalorder %v2025, 0
      %v2027 = vsel %vm2026, %v2025, 0
      %v2028 = vshrl.u32 %v2027, 5
      %v2029 = vand.u32 %v2027, 31
      %v2030 = vsub.s32 32, %v2029
      %v2031 = vshrl.u32 683565275, %v2030
      %v2032 = vshll.u32 683565275, %v2029
      %v2033 = vshrl.u32 2475754826, %v2030
      %v2034 = vor.u32 %v2032, %v2033
      %v2035 = vshll.u32 2475754826, %v2029
      %v2036 = vshrl.u32 2131351028, %v2030
      %v2037 = vor.u32 %v2035, %v2036
      %v2038 = vshll.u32 2131351028, %v2029
      %v2039 = vshrl.u32 2102212464, %v2030
      %v2040 = vor.u32 %v2038, %v2039
      %v2041 = vshll.u32 2102212464, %v2029
      %v2042 = vshrl.u32 920167782, %v2030
      %v2043 = vor.u32 %v2041, %v2042
      %v2044 = vshll.u32 920167782, %v2029
      %v2045 = vshrl.u32 1326507024, %v2030
      %v2046 = vor.u32 %v2044, %v2045
      %vm2047 = vcmp.lt.s32.totalorder %v2028, 1
      %vm2048 = vcmp.lt.s32.totalorder %v2028, 2
      %vm2049 = vcmp.lt.s32.totalorder %v2028, 3
      %vm2050 = vcmp.lt.s32.totalorder %v2028, 4
      %v2051 = vsel %vm2047, %v2031, %v2034
      %v2052 = vsel %vm2050, %v2040, 2102212464
      %v2053 = vsel %vm2049, %v2037, %v2052
      %v2054 = vsel %vm2048, %v2051, %v2053
      %v2055 = vsel %vm2047, %v2034, %v2037
      %v2056 = vsel %vm2050, %v2043, 920167782
      %v2057 = vsel %vm2049, %v2040, %v2056
      %v2058 = vsel %vm2048, %v2055, %v2057
      %v2059 = vsel %vm2047, %v2037, %v2040
      %v2060 = vsel %vm2050, %v2046, 1326507024
      %v2061 = vsel %vm2049, %v2043, %v2060
      %v2062 = vsel %vm2048, %v2059, %v2061
      %v2063 = vshll.u32 %v2023, 8
      %v2064 = vmul.u32.u64.compose %v2063, %v2062
      %v2065 = vextract.low.u32 %v2064
      %v2066 = vextract.high.u32 %v2064
      %v2067 = vmul.u32.u64.compose %v2063, %v2058
      %v2068 = vextract.low.u32 %v2067
      %v2069 = vextract.high.u32 %v2067
      %v2070 = vmul.u32 %v2063, %v2054
      %v2071 = vadd.s32 %v2066, %v2068
      %vm2072 = vc.u32 %v2066, %v2068
      %v2073 = vadd.s32 %v2069, 1
      %v2074 = vsel %vm2072, %v2073, %v2069
      %v2075 = vadd.s32 %v2070, %v2074
      %v2076 = vadd.s32 %v2075, 536870912
      %v2077 = vshrl.u32 %v2076, 30
      %v2078 = vshll.u32 %v2077, 30
      %v2079 = vsub.s32 %v2075, %v2078
      %vm2080 = vcmp.lt.s32.totalorder %v2079, 0
      %v2081 = vsub.s32 0, %v2079
      %v2082 = vsel %vm2080, %v2081, %v2079
      %v2083 = vclz %v2082
      %v2084 = vsub.s32 %v2083, 2
      %vm2085 = vcmp.gt.s32.totalorder 0, %v2084
      %v2086 = vsel %vm2085, 0, %v2084
      %v2087 = vsub.s32 32, %v2086
      %v2088 = vshll.u32 %v2079, %v2086
      %v2089 = vshrl.u32 %v2071, %v2087
      %v2090 = vor.u32 %v2088, %v2089
      %v2091 = vsub.s32 4294967266, %v2086
      %v2092 = vadd.s32 %v2091, 127
      %v2093 = vshll.u32 %v2092, 23
      %v2094 = vor.u32 4788187, %v2093
      %v2095 = vand.u32 2147483647, %v2094
      %v2097 = vcvt.s32.f32 %v2090
      %v2098 = vmul.f32 %v2097, %v2095
      %v2099 = vxor.u32 %v2098, 2147483648
      %v2100 = vsel %vm2017, %v2099, %v2098
      %v2101 = vsub.s32 4, %v2077
      %v2102 = vsel %vm2017, %v2101, %v2077
      %v2103 = vsel %vm2016, %v1489, %v2100
      %v2104 = vsel %vm2016, 0, %v2102
      %v2105 = vcosq.f32.pop %v2103
      %v2106 = vsinq.f32.pop %v2103
      %vm2107 = vweird.f32 %v1489
      %v2108 = vadd.s32 %v2104, 3
      %v2109 = vand.u32 %v2108, 3
      %vm2110 = vcmp.lt.s32.totalorder %v2109, 2
      %vm2111 = vcmp.eq.s32.totalorder %v2109, 0
      %v2112 = vxor.u32 %v2106, 2147483648
      %v2113 = vsel %vm2111, %v2105, %v2112
      %vm2114 = vcmp.eq.s32.totalorder %v2109, 2
      %v2115 = vxor.u32 %v2105, 2147483648
      %v2116 = vsel %vm2114, %v2115, %v2106
      %v2117 = vsel %vm2110, %v2113, %v2116
      %v2118 = vsel %vm2107, nan, %v2117
      %v2119 = vand.u32 2147483647, %v1491
      %vm2120 = vcmp.le.f32.partialorder %v2119, 0.7853982
      %vm2121 = vcmp.lt.s32.totalorder %v1491, 0
      %v2122 = vand.u32 %v1491, 2139095040
      %v2123 = vshrl.u32 %v2122, 23
      %v2124 = vsub.s32 %v2123, 127
      %v2125 = vand.u32 2147483647, %v1491
      %v2126 = vand.u32 %v2125, 8388607
      %v2127 = vor.u32 %v2126, 8388608
      %v2128 = vsub.s32 0, %v2127
      %v2129 = vadd.s32 %v2124, 1
      %vm2130 = vcmp.gt.s32.totalorder %v2129, 0
      %v2131 = vsel %vm2130, %v2129, 0
      %v2132 = vshrl.u32 %v2131, 5
      %v2133 = vand.u32 %v2131, 31
      %v2134 = vsub.s32 32, %v2133
      %v2135 = vshrl.u32 683565275, %v2134
      %v2136 = vshll.u32 683565275, %v2133
      %v2137 = vshrl.u32 2475754826, %v2134
      %v2138 = vor.u32 %v2136, %v2137
      %v2139 = vshll.u32 2475754826, %v2133
      %v2140 = vshrl.u32 2131351028, %v2134
      %v2141 = vor.u32 %v2139, %v2140
      %v2142 = vshll.u32 2131351028, %v2133
      %v2143 = vshrl.u32 2102212464, %v2134
      %v2144 = vor.u32 %v2142, %v2143
      %v2145 = vshll.u32 2102212464, %v2133
      %v2146 = vshrl.u32 920167782, %v2134
      %v2147 = vor.u32 %v2145, %v2146
      %v2148 = vshll.u32 920167782, %v2133
      %v2149 = vshrl.u32 1326507024, %v2134
      %v2150 = vor.u32 %v2148, %v2149
      %vm2151 = vcmp.lt.s32.totalorder %v2132, 1
      %vm2152 = vcmp.lt.s32.totalorder %v2132, 2
      %vm2153 = vcmp.lt.s32.totalorder %v2132, 3
      %vm2154 = vcmp.lt.s32.totalorder %v2132, 4
      %v2155 = vsel %vm2151, %v2135, %v2138
      %v2156 = vsel %vm2154, %v2144, 2102212464
      %v2157 = vsel %vm2153, %v2141, %v2156
      %v2158 = vsel %vm2152, %v2155, %v2157
      %v2159 = vsel %vm2151, %v2138, %v2141
      %v2160 = vsel %vm2154, %v2147, 920167782
      %v2161 = vsel %vm2153, %v2144, %v2160
      %v2162 = vsel %vm2152, %v2159, %v2161
      %v2163 = vsel %vm2151, %v2141, %v2144
      %v2164 = vsel %vm2154, %v2150, 1326507024
      %v2165 = vsel %vm2153, %v2147, %v2164
      %v2166 = vsel %vm2152, %v2163, %v2165
      %v2167 = vshll.u32 %v2127, 8
      %v2168 = vmul.u32.u64.compose %v2167, %v2166
      %v2169 = vextract.low.u32 %v2168
      %v2170 = vextract.high.u32 %v2168
      %v2171 = vmul.u32.u64.compose %v2167, %v2162
      %v2172 = vextract.low.u32 %v2171
      %v2173 = vextract.high.u32 %v2171
      %v2174 = vmul.u32 %v2167, %v2158
      %v2175 = vadd.s32 %v2170, %v2172
      %vm2176 = vc.u32 %v2170, %v2172
      %v2177 = vadd.s32 %v2173, 1
      %v2178 = vsel %vm2176, %v2177, %v2173
      %v2179 = vadd.s32 %v2174, %v2178
      %v2180 = vadd.s32 %v2179, 536870912
      %v2181 = vshrl.u32 %v2180, 30
      %v2182 = vshll.u32 %v2181, 30
      %v2183 = vsub.s32 %v2179, %v2182
      %vm2184 = vcmp.lt.s32.totalorder %v2183, 0
      %v2185 = vsub.s32 0, %v2183
      %v2186 = vsel %vm2184, %v2185, %v2183
      %v2187 = vclz %v2186
      %v2188 = vsub.s32 %v2187, 2
      %vm2189 = vcmp.gt.s32.totalorder 0, %v2188
      %v2190 = vsel %vm2189, 0, %v2188
      %v2191 = vsub.s32 32, %v2190
      %v2192 = vshll.u32 %v2183, %v2190
      %v2193 = vshrl.u32 %v2175, %v2191
      %v2194 = vor.u32 %v2192, %v2193
      %v2195 = vsub.s32 4294967266, %v2190
      %v2196 = vadd.s32 %v2195, 127
      %v2197 = vshll.u32 %v2196, 23
      %v2198 = vor.u32 4788187, %v2197
      %v2199 = vand.u32 2147483647, %v2198
      %v2201 = vcvt.s32.f32 %v2194
      %v2202 = vmul.f32 %v2201, %v2199
      %v2203 = vxor.u32 %v2202, 2147483648
      %v2204 = vsel %vm2121, %v2203, %v2202
      %v2205 = vsub.s32 4, %v2181
      %v2206 = vsel %vm2121, %v2205, %v2181
      %v2207 = vsel %vm2120, %v1491, %v2204
      %v2208 = vsel %vm2120, 0, %v2206
      %v2209 = vcosq.f32.pop %v2207
      %v2210 = vsinq.f32.pop %v2207
      %vm2211 = vweird.f32 %v1491
      %v2212 = vadd.s32 %v2208, 3
      %v2213 = vand.u32 %v2212, 3
      %vm2214 = vcmp.lt.s32.totalorder %v2213, 2
      %vm2215 = vcmp.eq.s32.totalorder %v2213, 0
      %v2216 = vxor.u32 %v2210, 2147483648
      %v2217 = vsel %vm2215, %v2209, %v2216
      %vm2218 = vcmp.eq.s32.totalorder %v2213, 2
      %v2219 = vxor.u32 %v2209, 2147483648
      %v2220 = vsel %vm2218, %v2219, %v2210
      %v2221 = vsel %vm2214, %v2217, %v2220
      %v2222 = vsel %vm2211, nan, %v2221
      %v2223 = vand.u32 2147483647, %v1493
      %vm2224 = vcmp.le.f32.partialorder %v2223, 0.7853982
      %vm2225 = vcmp.lt.s32.totalorder %v1493, 0
      %v2226 = vand.u32 %v1493, 2139095040
      %v2227 = vshrl.u32 %v2226, 23
      %v2228 = vsub.s32 %v2227, 127
      %v2229 = vand.u32 2147483647, %v1493
      %v2230 = vand.u32 %v2229, 8388607
      %v2231 = vor.u32 %v2230, 8388608
      %v2232 = vsub.s32 0, %v2231
      %v2233 = vadd.s32 %v2228, 1
      %vm2234 = vcmp.gt.s32.totalorder %v2233, 0
      %v2235 = vsel %vm2234, %v2233, 0
      %v2236 = vshrl.u32 %v2235, 5
      %v2237 = vand.u32 %v2235, 31
      %v2238 = vsub.s32 32, %v2237
      %v2239 = vshrl.u32 683565275, %v2238
      %v2240 = vshll.u32 683565275, %v2237
      %v2241 = vshrl.u32 2475754826, %v2238
      %v2242 = vor.u32 %v2240, %v2241
      %v2243 = vshll.u32 2475754826, %v2237
      %v2244 = vshrl.u32 2131351028, %v2238
      %v2245 = vor.u32 %v2243, %v2244
      %v2246 = vshll.u32 2131351028, %v2237
      %v2247 = vshrl.u32 2102212464, %v2238
      %v2248 = vor.u32 %v2246, %v2247
      %v2249 = vshll.u32 2102212464, %v2237
      %v2250 = vshrl.u32 920167782, %v2238
      %v2251 = vor.u32 %v2249, %v2250
      %v2252 = vshll.u32 920167782, %v2237
      %v2253 = vshrl.u32 1326507024, %v2238
      %v2254 = vor.u32 %v2252, %v2253
      %vm2255 = vcmp.lt.s32.totalorder %v2236, 1
      %vm2256 = vcmp.lt.s32.totalorder %v2236, 2
      %vm2257 = vcmp.lt.s32.totalorder %v2236, 3
      %vm2258 = vcmp.lt.s32.totalorder %v2236, 4
      %v2259 = vsel %vm2255, %v2239, %v2242
      %v2260 = vsel %vm2258, %v2248, 2102212464
      %v2261 = vsel %vm2257, %v2245, %v2260
      %v2262 = vsel %vm2256, %v2259, %v2261
      %v2263 = vsel %vm2255, %v2242, %v2245
      %v2264 = vsel %vm2258, %v2251, 920167782
      %v2265 = vsel %vm2257, %v2248, %v2264
      %v2266 = vsel %vm2256, %v2263, %v2265
      %v2267 = vsel %vm2255, %v2245, %v2248
      %v2268 = vsel %vm2258, %v2254, 1326507024
      %v2269 = vsel %vm2257, %v2251, %v2268
      %v2270 = vsel %vm2256, %v2267, %v2269
      %v2271 = vshll.u32 %v2231, 8
      %v2272 = vmul.u32.u64.compose %v2271, %v2270
      %v2273 = vextract.low.u32 %v2272
      %v2274 = vextract.high.u32 %v2272
      %v2275 = vmul.u32.u64.compose %v2271, %v2266
      %v2276 = vextract.low.u32 %v2275
      %v2277 = vextract.high.u32 %v2275
      %v2278 = vmul.u32 %v2271, %v2262
      %v2279 = vadd.s32 %v2274, %v2276
      %vm2280 = vc.u32 %v2274, %v2276
      %v2281 = vadd.s32 %v2277, 1
      %v2282 = vsel %vm2280, %v2281, %v2277
      %v2283 = vadd.s32 %v2278, %v2282
      %v2284 = vadd.s32 %v2283, 536870912
      %v2285 = vshrl.u32 %v2284, 30
      %v2286 = vshll.u32 %v2285, 30
      %v2287 = vsub.s32 %v2283, %v2286
      %vm2288 = vcmp.lt.s32.totalorder %v2287, 0
      %v2289 = vsub.s32 0, %v2287
      %v2290 = vsel %vm2288, %v2289, %v2287
      %v2291 = vclz %v2290
      %v2292 = vsub.s32 %v2291, 2
      %vm2293 = vcmp.gt.s32.totalorder 0, %v2292
      %v2294 = vsel %vm2293, 0, %v2292
      %v2295 = vsub.s32 32, %v2294
      %v2296 = vshll.u32 %v2287, %v2294
      %v2297 = vshrl.u32 %v2279, %v2295
      %v2298 = vor.u32 %v2296, %v2297
      %v2299 = vsub.s32 4294967266, %v2294
      %v2300 = vadd.s32 %v2299, 127
      %v2301 = vshll.u32 %v2300, 23
      %v2302 = vor.u32 4788187, %v2301
      %v2303 = vand.u32 2147483647, %v2302
      %v2305 = vcvt.s32.f32 %v2298
      %v2306 = vmul.f32 %v2305, %v2303
      %v2307 = vxor.u32 %v2306, 2147483648
      %v2308 = vsel %vm2225, %v2307, %v2306
      %v2309 = vsub.s32 4, %v2285
      %v2310 = vsel %vm2225, %v2309, %v2285
      %v2311 = vsel %vm2224, %v1493, %v2308
      %v2312 = vsel %vm2224, 0, %v2310
      %v2313 = vcosq.f32.pop %v2311
      %v2314 = vsinq.f32.pop %v2311
      %vm2315 = vweird.f32 %v1493
      %v2316 = vadd.s32 %v2312, 3
      %v2317 = vand.u32 %v2316, 3
      %vm2318 = vcmp.lt.s32.totalorder %v2317, 2
      %vm2319 = vcmp.eq.s32.totalorder %v2317, 0
      %v2320 = vxor.u32 %v2314, 2147483648
      %v2321 = vsel %vm2319, %v2313, %v2320
      %vm2322 = vcmp.eq.s32.totalorder %v2317, 2
      %v2323 = vxor.u32 %v2313, 2147483648
      %v2324 = vsel %vm2322, %v2323, %v2314
      %v2325 = vsel %vm2318, %v2321, %v2324
      %v2326 = vsel %vm2315, nan, %v2325
      %v2327 = vld [vmem:[%s5] sm:$0x3]
      %v2328 = vld [vmem:[%s6] sm:$0x7]
      %v2329 = vpack.c.bf16 %v1806, %v1598
      %v2330 = vpack.c.bf16 %v1910, %v1702
      %v2331 = vpack.c.bf16 %v2222, %v2014
      %v2332 = vpack.c.bf16 %v2326, %v2118
      %2334 = vset.pattern.permute.xlu0 0
      %2335 = vperm.xlu0 %2334, %v2328
      %v2336 = vpop.permute.xlu0 %2335
      %v2339 = vsel %vm1435, %v2327, 0
      %2341 = vmatprep.subr.bf16.mxu0 %v2330
      %2342 = vmatpush1.bf16.msra.mxu0 %v2329
      %2343 = vmatprep.subr.bf16.mxu0 %v2332
      %2344 = vmatpush1.bf16.msra.mxu0 %v2331
      %2345 = vmatprep.subr.bf16.mxu0 0
      %2346 = vmatpush1.bf16.msra.mxu0 0
      %2347 = vmatprep.subr.bf16.mxu0 0
      %2348 = vmatpush1.bf16.msra.mxu0 0
      %2349 = vmatprep.subr.bf16.mxu0 0
      %2350 = vmatpush1.bf16.msra.mxu0 0
      %2351 = vmatprep.subr.bf16.mxu0 0
      %2352 = vmatpush1.bf16.msra.mxu0 0
      %2353 = vmatprep.subr.bf16.mxu0 0
      %2354 = vmatpush1.bf16.msra.mxu0 0
      %2355 = vmatprep.subr.bf16.mxu0 0
      %2356 = vmatpush1.bf16.msra.mxu0 0
      %2357 = vmatprep.subr.bf16.mxu0 0
      %2358 = vmatpush1.bf16.msra.mxu0 0
      %2359 = vmatprep.subr.bf16.mxu0 0
      %2360 = vmatpush1.bf16.msra.mxu0 0
      %2361 = vmatprep.subr.bf16.mxu0 0
      %2362 = vmatpush1.bf16.msra.mxu0 0
      %2363 = vmatprep.subr.bf16.mxu0 0
      %2364 = vmatpush1.bf16.msra.mxu0 0
      %2365 = vmatprep.subr.bf16.mxu0 0
      %2366 = vmatpush1.bf16.msra.mxu0 0
      %2367 = vmatprep.subr.bf16.mxu0 0
      %2368 = vmatpush1.bf16.msra.mxu0 0
      %2369 = vmatprep.subr.bf16.mxu0 0
      %2370 = vmatpush1.bf16.msra.mxu0 0
      %2371 = vmatprep.subr.bf16.mxu0 0
      %2372 = vmatpush1.bf16.msra.mxu0 0
      %2373 = vmatprep.mubr.bf16.mxu0 0
      %2374 = vmatmul.mubr.bf16.gmra.mrb[0].mxu0 %v2339
      %v2375 = vpop.f32.mrb[0].mxu0
      %v2376 = vadd.f32 %v2336, %v2375
      %v2377 = vpop.f32.mrb[0].mxu0
      %v2378 = vadd.f32 %v2336, %v2377
      %v2379 = vpop.f32.mrb[0].mxu0
      %v2380 = vpop.f32.mrb[0].mxu0
      %2381 = vdwg.mxu0
      %v2382 = vtanh.pop %v2376
      %v2383 = vtanh.pop %v2378
      %v2386 = vcombine.low %v2382, %v2383
      %2388 = vst [vmem:[%s316] sm:$0x77] %v2386
      %s2389 = smul.u32 2, %s23
      %p2390 = scmp.lt.s32.totalorder %s22, 1
      %s2391 = scalar_select %p2390, %s22, 1
      %p2392 = scmp.lt.s32.totalorder %s2389, 1
      %s2393 = scalar_select %p2392, %s2389, 1
      %s2394 = smul.addr %s2391, 2
      %s2395 = sadd.s32 %s2393, %s2394
      %s2396 = smul.addr %s2395, 4
      %s2397 = scalar_lea.vmem %s7, %s2396
      // Predicated region
      $region49: #{tpu_custom_call.1} parent=47 // pred_check
        %p2398 = pneg %p204
      $region50: #{tpu_custom_call.1} parent=47 // pred_check_branch
        %2400 = sbr.rel (%p2398) target = $region52
      $region51: #{tpu_custom_call.1} parent=47 // pred_region
        %s2401 = smul.u32 2, %s23
      $region52: #{tpu_custom_call.1} parent=47 // pred_fallthru
        _
    $region48: #{tpu_custom_call.1} parent=5 // pred_fallthru
      _
    %p2402 = scmp.le.s32.totalorder 2, %s13
    // Predicated region
    $region53: #{tpu_custom_call.1} parent=5 // pred_check
      %p2403 = pneg %p2402
    $region54: #{tpu_custom_call.1} parent=5 // pred_check_branch
      %2405 = sbr.rel (%p2403) target = $region56
    $region55: #{tpu_custom_call.1} parent=5 // pred_region
      %s2406 = ssub.s32 %s13, 2
      // Predicated region
      $region57: #{tpu_custom_call.1} parent=55 // pred_check
        %p2407 = pneg %p210
      $region58: #{tpu_custom_call.1} parent=55 // pred_check_branch
        %2409 = sbr.rel (%p2407) target = $region60
      $region59: #{tpu_custom_call.1} parent=55 // pred_region
        %s2410 = smul.u32 2, %s25
        %p2411 = scmp.lt.s32.totalorder %s24, 1
        %s2412 = scalar_select %p2411, %s24, 1
        %p2413 = scmp.lt.s32.totalorder %s2410, 1
        %s2414 = scalar_select %p2413, %s2410, 1
        %s2415 = smul.addr %s2412, 2
        %s2416 = sadd.s32 %s2414, %s2415
        %s2417 = smul.addr %s2416, 4
        %s2418 = scalar_lea.vmem %s7, %s2417
      $region60: #{tpu_custom_call.1} parent=55 // pred_fallthru
        _
    $region56: #{tpu_custom_call.1} parent=5 // pred_fallthru
      _
  $region6: #{tpu_custom_call.1} parent=0 // loop_footer
    %s17 = sadd.s32 1, %s13
  $region7: #{tpu_custom_call.1} parent=0 // loop_footer_branch
    %12 = sbr.rel target = $region3
  $region8: #{tpu_custom_call.1} parent=0 // loop_exit
    _

</llo_original>
